<compile_context>
chip_gen: v7x
topology: tpu7x:2x2x1
jax: 0.10.0
libtpu: 0.0.40
codegen_flags: <defaults>
</compile_context>

<pallas_src>
import functools
import math

import jax
import jax.numpy as jnp
from jax import lax
from jax.experimental import pallas as pl
from jax.experimental.pallas import tpu as pltpu


# ----------------------------- traced helpers --------------------------------

def _layernorm(x, g, b, eps=1e-5):
    # PyTorch nn.LayerNorm over last dim, biased variance, eps=1e-5 (f32).
    mean = jnp.mean(x, axis=-1, keepdims=True)
    var = jnp.mean((x - mean) ** 2, axis=-1, keepdims=True)
    return (x - mean) * lax.rsqrt(var + eps) * g + b


def _gelu(x):
    # Exact GELU (PyTorch nn.GELU default, approximate='none').
    return 0.5 * x * (1.0 + lax.erf(x / math.sqrt(2.0)))


# ----------------------------- patch-embedding kernel ------------------------

def embed_kernel(patches_ref, w_ref, b_ref, pos_ref, o_ref):
    # emb = patches @ conv_w + conv_b + pos   (tokens flattened to B*P rows)
    o_ref[...] = (jnp.dot(patches_ref[...], w_ref[...],
                          preferred_element_type=jnp.float32)
                  + b_ref[...] + pos_ref[...])


# ----------------------------- fused encoder kernel --------------------------

def encoder_kernel(batch, seq, heads, head_dim,
                   emb_ref,
                   ln1g_ref, ln1b_ref, wqkv_ref, bqkv_ref, wo_ref, bo_ref,
                   ln2g_ref, ln2b_ref, f1w_ref, f1b_ref, f2w_ref, f2b_ref,
                   lnfg_ref, lnfb_ref,
                   o_ref):
    # Grid: (layer,).  o_ref block (B*P, D) is resident across all layer
    # iterations and doubles as the residual-stream accumulator; per-layer
    # weights stream through the BlockSpec pipeline (double-buffered).
    layer = pl.program_id(0)
    n_layers = pl.num_programs(0)
    hh = heads * head_dim
    hd = head_dim

    # ---- first layer iteration: load the embedded tokens -------------------
    @pl.when(layer == 0)
    def _():
        o_ref[...] = emb_ref[...]

    x = o_ref[...]                                               # (BT, D) f32

    # ---- self-attention branch ---------------------------------------------
    y = _layernorm(x, ln1g_ref[0], ln1b_ref[0])
    # One fused (BT, D) @ (D, 3*H*Hd) matmul; Q columns are pre-scaled by
    # 1/sqrt(head_dim) at init, so no score-matrix scaling is needed below.
    qkv = jnp.dot(y.astype(jnp.bfloat16), wqkv_ref[0],
                  preferred_element_type=jnp.float32) + bqkv_ref[0]

    ctx_heads = []
    for h in range(heads):  # small static head loop; dots batched over batch
        q = qkv[:, h * hd:(h + 1) * hd].reshape(batch, seq, hd)
        k = qkv[:, hh + h * hd:hh + (h + 1) * hd].reshape(batch, seq, hd)
        v = qkv[:, 2 * hh + h * hd:2 * hh + (h + 1) * hd].reshape(batch, seq, hd)

        s = jnp.einsum('bqd,bkd->bqk',
                       q.astype(jnp.bfloat16), k.astype(jnp.bfloat16),
                       preferred_element_type=jnp.float32)
        s = s - jnp.max(s, axis=-1, keepdims=True)
        p = jnp.exp(s)
        p = p * pl.reciprocal(jnp.sum(p, axis=-1, keepdims=True), approx=True)
        c = jnp.einsum('bqk,bkd->bqd',
                       p.astype(jnp.bfloat16), v.astype(jnp.bfloat16),
                       preferred_element_type=jnp.float32)
        ctx_heads.append(c.reshape(batch * seq, hd))
    ctx = jnp.concatenate(ctx_heads, axis=-1)                    # (BT, H*Hd)

    attn = jnp.dot(ctx.astype(jnp.bfloat16), wo_ref[0],          # (BT, D)
                   preferred_element_type=jnp.float32) + bo_ref[0]
    x = x + attn                                                 # residual

    # ---- MLP branch ---------------------------------------------------------
    y2 = _layernorm(x, ln2g_ref[0], ln2b_ref[0])
    h1 = jnp.dot(y2.astype(jnp.bfloat16), f1w_ref[0],
                 preferred_element_type=jnp.float32) + f1b_ref[0]
    h1 = _gelu(h1)
    mlp = jnp.dot(h1.astype(jnp.bfloat16), f2w_ref[0],
                  preferred_element_type=jnp.float32) + f2b_ref[0]
    x = x + mlp                                                  # residual

    # ---- write back residual stream / final layernorm ----------------------
    @pl.when(layer < n_layers - 1)
    def _():
        o_ref[...] = x

    @pl.when(layer == n_layers - 1)
    def _():
        o_ref[...] = _layernorm(x, lnfg_ref[...], lnfb_ref[...])


# ----------------------------- glue (plain JAX) --------------------------------

def extract_patches(x, fh, fw):
    # x: (B, 3, H, W) NCHW -> (B, num_patches, 3*fh*fw); channel-major inside
    # each patch to match Conv2d weight flattening over (c, ih, iw).
    B, C, H, W = x.shape
    gh, gw = H // fh, W // fw
    x = x.reshape(B, C, gh, fh, gw, fw)
    x = x.transpose(0, 2, 4, 1, 3, 5)              # (B, gh, gw, C, fh, fw)
    return x.reshape(B, gh * gw, C * fh * fw)


def init_params(key, *, emb_dim, mlp_dim, num_heads, num_layers,
                num_patches, fh, fw):
    head_dim = emb_dim // num_heads
    hh = num_heads * head_dim
    cin = 3 * fh * fw
    keys = iter(jax.random.split(key, 2 + 6 * num_layers))
    s = 0.02  # deterministic synthetic weight scale
    inv_scale = 1.0 / (head_dim ** 0.5)  # folded into Q weights (free)

    conv_w = (s * jax.random.normal(next(keys), (emb_dim, cin), jnp.float32)).T
    pos = s * jax.random.normal(next(keys), (num_patches, emb_dim), jnp.float32)

    def qkv_flat(k, scale=1.0):
        # torch LinearGeneral weight (D, H, Hd) flattened to (D, H*Hd)
        w = s * jax.random.normal(k, (emb_dim, num_heads, head_dim), jnp.float32)
        return (w * scale).reshape(emb_dim, hh)

    wqkv, bqkv, wo, bo = [], [], [], []
    f1w, f1b, f2w, f2b = [], [], [], []
    for _ in range(num_layers):
        qw = qkv_flat(next(keys), inv_scale)   # Q pre-scaled by 1/sqrt(Hd)
        kw = qkv_flat(next(keys))
        vw = qkv_flat(next(keys))
        wqkv.append(jnp.concatenate([qw, kw, vw], axis=1))       # (D, 3*H*Hd)
        bqkv.append(jnp.zeros((1, 3 * hh), jnp.float32))         # (Q bias would also be scaled)
        # out proj: torch (H, Hd, D) -> (H*Hd, D)
        wo.append((s * jax.random.normal(next(keys),
                                         (num_heads, head_dim, emb_dim),
                                         jnp.float32)).reshape(hh, emb_dim))
        bo.append(jnp.zeros((1, emb_dim), jnp.float32))
        f1w.append(s * jax.random.normal(next(keys), (emb_dim, mlp_dim), jnp.float32))
        f1b.append(jnp.zeros((1, mlp_dim), jnp.float32))
        f2w.append(s * jax.random.normal(next(keys), (mlp_dim, emb_dim), jnp.float32))
        f2b.append(jnp.zeros((1, emb_dim), jnp.float32))

    return {
        # matmul weights stored in bf16 (f32 accumulation inside the kernels)
        'conv_w': conv_w.astype(jnp.bfloat16),                   # (Cin, D)
        'conv_b': jnp.zeros((1, emb_dim), jnp.float32),
        'pos': pos,                                              # (P, D)
        'ln1_g': jnp.ones((num_layers, 1, emb_dim), jnp.float32),
        'ln1_b': jnp.zeros((num_layers, 1, emb_dim), jnp.float32),
        'wqkv': jnp.stack(wqkv).astype(jnp.bfloat16),            # (L, D, 3D)
        'bqkv': jnp.stack(bqkv),                                 # (L, 1, 3D)
        'wo': jnp.stack(wo).astype(jnp.bfloat16),                # (L, D, D)
        'bo': jnp.stack(bo),                                     # (L, 1, D)
        'ln2_g': jnp.ones((num_layers, 1, emb_dim), jnp.float32),
        'ln2_b': jnp.zeros((num_layers, 1, emb_dim), jnp.float32),
        'f1w': jnp.stack(f1w).astype(jnp.bfloat16),              # (L, D, M)
        'f1b': jnp.stack(f1b),                                   # (L, 1, M)
        'f2w': jnp.stack(f2w).astype(jnp.bfloat16),              # (L, M, D)
        'f2b': jnp.stack(f2b),                                   # (L, 1, D)
        'lnf_g': jnp.ones((1, emb_dim), jnp.float32),
        'lnf_b': jnp.zeros((1, emb_dim), jnp.float32),
    }


def vit_forward(x, params, *, fh, fw, num_heads, head_dim):
    B = x.shape[0]
    patches = extract_patches(x, fh, fw)                         # (B, P, Cin)
    P, Cin = patches.shape[1], patches.shape[2]
    D = num_heads * head_dim
    HH = num_heads * head_dim
    M = params['f1w'].shape[2]
    L = params['wqkv'].shape[0]
    BT = B * P                                                   # flattened tokens

    patches_flat = patches.reshape(BT, Cin).astype(jnp.bfloat16)
    pos_full = jnp.tile(params['pos'], (B, 1))                   # (BT, D)

    # --- patch embedding (layer-0-only operands kept out of the encoder) ----
    emb = pl.pallas_call(
        embed_kernel,
        out_shape=jax.ShapeDtypeStruct((BT, D), jnp.float32),
    )(patches_flat, params['conv_w'], params['conv_b'], pos_full)

    kernel = functools.partial(encoder_kernel, B, P, num_heads, head_dim)

    # Grid: (layer,) only.  Weights are streamed once per layer for the WHOLE
    # batch (batch folded into the block); layer axis is sequential.
    in_specs = [
        pl.BlockSpec((BT, D),       lambda l: (0, 0)),        # emb (layer 0)
        pl.BlockSpec((1, 1, D),     lambda l: (l, 0, 0)),     # ln1_g
        pl.BlockSpec((1, 1, D),     lambda l: (l, 0, 0)),     # ln1_b
        pl.BlockSpec((1, D, 3 * HH), lambda l: (l, 0, 0)),    # wqkv (fused)
        pl.BlockSpec((1, 1, 3 * HH), lambda l: (l, 0, 0)),    # bqkv
        pl.BlockSpec((1, HH, D),    lambda l: (l, 0, 0)),     # wo
        pl.BlockSpec((1, 1, D),     lambda l: (l, 0, 0)),     # bo
        pl.BlockSpec((1, 1, D),     lambda l: (l, 0, 0)),     # ln2_g
        pl.BlockSpec((1, 1, D),     lambda l: (l, 0, 0)),     # ln2_b
        pl.BlockSpec((1, D, M),     lambda l: (l, 0, 0)),     # f1w
        pl.BlockSpec((1, 1, M),     lambda l: (l, 0, 0)),     # f1b
        pl.BlockSpec((1, M, D),     lambda l: (l, 0, 0)),     # f2w
        pl.BlockSpec((1, 1, D),     lambda l: (l, 0, 0)),     # f2b
        pl.BlockSpec((1, D),        lambda l: (0, 0)),        # lnf_g
        pl.BlockSpec((1, D),        lambda l: (0, 0)),        # lnf_b
    ]
    out = pl.pallas_call(
        kernel,
        out_shape=jax.ShapeDtypeStruct((BT, D), jnp.float32),
        grid=(L,),
        in_specs=in_specs,
        out_specs=pl.BlockSpec((BT, D), lambda l: (0, 0)),
        compiler_params=pltpu.CompilerParams(
            dimension_semantics=("arbitrary",),
            # 48 MiB: above the 32 MiB default scoped limit, safely under
            # v7x's 64 MiB physical VMEM (raise toward ~100 MiB on v5e/v6e).
            vmem_limit_bytes=48 * 1024 * 1024),
    )(emb,
      params['ln1_g'], params['ln1_b'], params['wqkv'], params['bqkv'],
      params['wo'], params['bo'], params['ln2_g'], params['ln2_b'],
      params['f1w'], params['f1b'], params['f2w'], params['f2b'],
      params['lnf_g'], params['lnf_b'])

    return out.reshape(B, P, D)


# ----------------------------- main -------------------------------------------

if __name__ == "__main__":
    # Small config consistent with the module: image 16x16, patch 4x4 ->
    # 16 patches (8-aligned token count); emb_dim=32, mlp_dim=64, 4 heads
    # (head_dim=8), 2 layers, batch=2.
    B = 2
    IMG, PATCH = 16, 4
    EMB, MLP, HEADS, LAYERS = 32, 64, 4, 2
    HEAD_DIM = EMB // HEADS
    GH = IMG // PATCH
    NUM_PATCHES = GH * GH

    key = jax.random.PRNGKey(0)
    k_x, k_p = jax.random.split(key)
    x = jax.random.normal(k_x, (B, 3, IMG, IMG), jnp.float32)    # NCHW input

    params = init_params(k_p, emb_dim=EMB, mlp_dim=MLP, num_heads=HEADS,
                         num_layers=LAYERS, num_patches=NUM_PATCHES,
                         fh=PATCH, fw=PATCH)

    fwd = jax.jit(functools.partial(vit_forward, fh=PATCH, fw=PATCH,
                                    num_heads=HEADS, head_dim=HEAD_DIM))
    out = fwd(x, params)
    jax.block_until_ready(out)
    assert out.shape == (B, NUM_PATCHES, EMB)
    assert bool(jnp.all(jnp.isfinite(out)))
    print("KERNEL_OK")
</pallas_src>

<mosaic_0001>
module attributes {stable_mosaic.version = 11 : i64} {
  func.func @embed_kernel(%arg0: memref<32x48xbf16, #tpu.memory_space<vmem>>, %arg1: memref<48x32xbf16, #tpu.memory_space<vmem>>, %arg2: memref<1x32xf32, #tpu.memory_space<vmem>>, %arg3: memref<32x32xf32, #tpu.memory_space<vmem>>, %arg4: memref<32x32xf32, #tpu.memory_space<vmem>>) attributes {dimension_semantics = [], scalar_prefetch = 0 : i64, scratch_operands = 0 : i64, tpu.core_type = #tpu.core_type<tc>} {
    %c0 = arith.constant 0 : index
    %c0_0 = arith.constant 0 : index
    %0 = vector.load %arg0[%c0, %c0_0] : memref<32x48xbf16, #tpu.memory_space<vmem>>, vector<32x48xbf16>
    %c0_1 = arith.constant 0 : index
    %c0_2 = arith.constant 0 : index
    %1 = vector.load %arg1[%c0_1, %c0_2] : memref<48x32xbf16, #tpu.memory_space<vmem>>, vector<48x32xbf16>
    %cst = arith.constant dense<0.000000e+00> : vector<32x32xf32>
    %2 = tpu.matmul %0, %1, %cst {dimension_numbers = #tpu.dot_dimension_numbers<[1], [0], [0], [1], [0, 0, 1, 1], [], []>} : vector<32x48xbf16>, vector<48x32xbf16>, vector<32x32xf32> -> vector<32x32xf32>
    %c0_3 = arith.constant 0 : index
    %c0_4 = arith.constant 0 : index
    %3 = vector.load %arg2[%c0_3, %c0_4] : memref<1x32xf32, #tpu.memory_space<vmem>>, vector<1x32xf32>
    %4 = vector.broadcast %3 : vector<1x32xf32> to vector<32x32xf32>
    %5 = arith.addf %2, %4 : vector<32x32xf32>
    %c0_5 = arith.constant 0 : index
    %c0_6 = arith.constant 0 : index
    %6 = vector.load %arg3[%c0_5, %c0_6] : memref<32x32xf32, #tpu.memory_space<vmem>>, vector<32x32xf32>
    %7 = arith.addf %5, %6 : vector<32x32xf32>
    %c0_7 = arith.constant 0 : index
    %c0_8 = arith.constant 0 : index
    %8 = vector.load %arg4[%c0_7, %c0_8] : memref<32x32xf32, #tpu.memory_space<vmem>>, vector<32x32xf32>
    tpu.vector_store %arg4[%c0_7, %c0_8], %7 {strides = array<i32>} : memref<32x32xf32, #tpu.memory_space<vmem>>, vector<32x32xf32>,
    return
  }
}

module attributes {stable_mosaic.version = 11 : i64} {
  func.func @encoder_kernel(%arg0: i32, %arg1: memref<32x32xf32, #tpu.memory_space<vmem>>, %arg2: memref<1x1x32xf32, #tpu.memory_space<vmem>>, %arg3: memref<1x1x32xf32, #tpu.memory_space<vmem>>, %arg4: memref<1x32x96xbf16, #tpu.memory_space<vmem>>, %arg5: memref<1x1x96xf32, #tpu.memory_space<vmem>>, %arg6: memref<1x32x32xbf16, #tpu.memory_space<vmem>>, %arg7: memref<1x1x32xf32, #tpu.memory_space<vmem>>, %arg8: memref<1x1x32xf32, #tpu.memory_space<vmem>>, %arg9: memref<1x1x32xf32, #tpu.memory_space<vmem>>, %arg10: memref<1x32x64xbf16, #tpu.memory_space<vmem>>, %arg11: memref<1x1x64xf32, #tpu.memory_space<vmem>>, %arg12: memref<1x64x32xbf16, #tpu.memory_space<vmem>>, %arg13: memref<1x1x32xf32, #tpu.memory_space<vmem>>, %arg14: memref<1x32xf32, #tpu.memory_space<vmem>>, %arg15: memref<1x32xf32, #tpu.memory_space<vmem>>, %arg16: memref<32x32xf32, #tpu.memory_space<vmem>>) attributes {dimension_semantics = [#tpu.dimension_semantics<arbitrary>], iteration_bounds = array<i64: 2>, scalar_prefetch = 0 : i64, scratch_operands = 0 : i64, tpu.core_type = #tpu.core_type<tc>, window_params = [{pipeline_mode = #tpu.pipeline_mode<synchronous>, transform_indices = @transform_0, window_bounds = array<i64: 32, 32>}, {transform_indices = @transform_1, window_bounds = array<i64: 1, 1, 32>}, {transform_indices = @transform_2, window_bounds = array<i64: 1, 1, 32>}, {transform_indices = @transform_3, window_bounds = array<i64: 1, 32, 96>}, {transform_indices = @transform_4, window_bounds = array<i64: 1, 1, 96>}, {transform_indices = @transform_5, window_bounds = array<i64: 1, 32, 32>}, {transform_indices = @transform_6, window_bounds = array<i64: 1, 1, 32>}, {transform_indices = @transform_7, window_bounds = array<i64: 1, 1, 32>}, {transform_indices = @transform_8, window_bounds = array<i64: 1, 1, 32>}, {transform_indices = @transform_9, window_bounds = array<i64: 1, 32, 64>}, {transform_indices = @transform_10, window_bounds = array<i64: 1, 1, 64>}, {transform_indices = @transform_11, window_bounds = array<i64: 1, 64, 32>}, {transform_indices = @transform_12, window_bounds = array<i64: 1, 1, 32>}, {pipeline_mode = #tpu.pipeline_mode<synchronous>, transform_indices = @transform_13, window_bounds = array<i64: 1, 32>}, {pipeline_mode = #tpu.pipeline_mode<synchronous>, transform_indices = @transform_14, window_bounds = array<i64: 1, 32>}, {pipeline_mode = #tpu.pipeline_mode<synchronous>, transform_indices = @transform_15, window_bounds = array<i64: 32, 32>}]} {
    %c0_i32 = arith.constant 0 : i32
    %0 = arith.cmpi eq, %arg0, %c0_i32 : i32
    %1 = arith.extui %0 : i1 to i32
    %c0_i32_0 = arith.constant 0 : i32
    %2 = arith.cmpi ne, %1, %c0_i32_0 : i32
    scf.if %2 {
      %c0_73 = arith.constant 0 : index
      %c0_74 = arith.constant 0 : index
      %197 = vector.load %arg1[%c0_73, %c0_74] : memref<32x32xf32, #tpu.memory_space<vmem>>, vector<32x32xf32>
      %c0_75 = arith.constant 0 : index
      %c0_76 = arith.constant 0 : index
      %198 = vector.load %arg16[%c0_75, %c0_76] : memref<32x32xf32, #tpu.memory_space<vmem>>, vector<32x32xf32>
      tpu.vector_store %arg16[%c0_75, %c0_76], %197 {strides = array<i32>} : memref<32x32xf32, #tpu.memory_space<vmem>>, vector<32x32xf32>,
    } else {
    }
    %c0 = arith.constant 0 : index
    %c0_1 = arith.constant 0 : index
    %3 = vector.load %arg16[%c0, %c0_1] : memref<32x32xf32, #tpu.memory_space<vmem>>, vector<32x32xf32>
    %c0_2 = arith.constant 0 : index
    %c0_3 = arith.constant 0 : index
    %c0_4 = arith.constant 0 : index
    %4 = vector.load %arg2[%c0_2, %c0_3, %c0_4] : memref<1x1x32xf32, #tpu.memory_space<vmem>>, vector<1x1x32xf32>
    %5 = vector.shape_cast %4 : vector<1x1x32xf32> to vector<1x32xf32>
    %c0_5 = arith.constant 0 : index
    %c0_6 = arith.constant 0 : index
    %c0_7 = arith.constant 0 : index
    %6 = vector.load %arg3[%c0_5, %c0_6, %c0_7] : memref<1x1x32xf32, #tpu.memory_space<vmem>>, vector<1x1x32xf32>
    %7 = vector.shape_cast %6 : vector<1x1x32xf32> to vector<1x32xf32>
    %cst = arith.constant dense<0.000000e+00> : vector<32xf32>
    %8 = vector.multi_reduction <add>, %3, %cst [1] : vector<32x32xf32> to vector<32xf32>
    %9 = vector.shape_cast %8 : vector<32xf32> to vector<32x1xf32>
    %cst_8 = arith.constant 3.200000e+01 : f32
    %10 = vector.broadcast %cst_8 : f32 to vector<32x1xf32>
    %11 = arith.divf %9, %10 : vector<32x1xf32>
    %12 = vector.broadcast %11 : vector<32x1xf32> to vector<32x32xf32>
    %13 = arith.subf %3, %12 : vector<32x32xf32>
    %14 = arith.mulf %13, %13 : vector<32x32xf32>
    %cst_9 = arith.constant dense<0.000000e+00> : vector<32xf32>
    %15 = vector.multi_reduction <add>, %14, %cst_9 [1] : vector<32x32xf32> to vector<32xf32>
    %16 = vector.shape_cast %15 : vector<32xf32> to vector<32x1xf32>
    %cst_10 = arith.constant 3.200000e+01 : f32
    %17 = vector.broadcast %cst_10 : f32 to vector<32x1xf32>
    %18 = arith.divf %16, %17 : vector<32x1xf32>
    %19 = vector.broadcast %11 : vector<32x1xf32> to vector<32x32xf32>
    %20 = arith.subf %3, %19 : vector<32x32xf32>
    %cst_11 = arith.constant 9.99999974E-6 : f32
    %21 = vector.broadcast %cst_11 : f32 to vector<32x1xf32>
    %22 = arith.addf %18, %21 : vector<32x1xf32>
    %23 = math.rsqrt %22 : vector<32x1xf32>
    %24 = vector.broadcast %23 : vector<32x1xf32> to vector<32x32xf32>
    %25 = arith.mulf %20, %24 : vector<32x32xf32>
    %26 = vector.broadcast %5 : vector<1x32xf32> to vector<32x32xf32>
    %27 = arith.mulf %25, %26 : vector<32x32xf32>
    %28 = vector.broadcast %7 : vector<1x32xf32> to vector<32x32xf32>
    %29 = arith.addf %27, %28 : vector<32x32xf32>
    %30 = arith.truncf %29 : vector<32x32xf32> to vector<32x32xbf16>
    %c0_12 = arith.constant 0 : index
    %c0_13 = arith.constant 0 : index
    %c0_14 = arith.constant 0 : index
    %31 = vector.load %arg4[%c0_12, %c0_13, %c0_14] : memref<1x32x96xbf16, #tpu.memory_space<vmem>>, vector<1x32x96xbf16>
    %32 = vector.shape_cast %31 : vector<1x32x96xbf16> to vector<32x96xbf16>
    %cst_15 = arith.constant dense<0.000000e+00> : vector<32x96xf32>
    %33 = tpu.matmul %30, %32, %cst_15 {dimension_numbers = #tpu.dot_dimension_numbers<[1], [0], [0], [1], [0, 0, 1, 1], [], []>} : vector<32x32xbf16>, vector<32x96xbf16>, vector<32x96xf32> -> vector<32x96xf32>
    %c0_16 = arith.constant 0 : index
    %c0_17 = arith.constant 0 : index
    %c0_18 = arith.constant 0 : index
    %34 = vector.load %arg5[%c0_16, %c0_17, %c0_18] : memref<1x1x96xf32, #tpu.memory_space<vmem>>, vector<1x1x96xf32>
    %35 = vector.shape_cast %34 : vector<1x1x96xf32> to vector<1x96xf32>
    %36 = vector.broadcast %35 : vector<1x96xf32> to vector<32x96xf32>
    %37 = arith.addf %33, %36 : vector<32x96xf32>
    %38 = vector.extract_strided_slice %37 {offsets = [0, 0], sizes = [32, 8], strides = [1, 1]} : vector<32x96xf32> to vector<32x8xf32>
    %39 = vector.shape_cast %38 : vector<32x8xf32> to vector<2x16x8xf32>
    %40 = vector.extract_strided_slice %37 {offsets = [0, 32], sizes = [32, 8], strides = [1, 1]} : vector<32x96xf32> to vector<32x8xf32>
    %41 = vector.shape_cast %40 : vector<32x8xf32> to vector<2x16x8xf32>
    %42 = vector.extract_strided_slice %37 {offsets = [0, 64], sizes = [32, 8], strides = [1, 1]} : vector<32x96xf32> to vector<32x8xf32>
    %43 = vector.shape_cast %42 : vector<32x8xf32> to vector<2x16x8xf32>
    %44 = arith.truncf %39 : vector<2x16x8xf32> to vector<2x16x8xbf16>
    %45 = arith.truncf %41 : vector<2x16x8xf32> to vector<2x16x8xbf16>
    "tpu.trace_start"() <{level = 10 : i32, message = "bqd,bkd->bqk"}> : () -> ()
    %cst_19 = arith.constant dense<0.000000e+00> : vector<2x16x16xf32>
    %46 = tpu.matmul %44, %45, %cst_19 {dimension_numbers = #tpu.dot_dimension_numbers<[2], [2], [1], [1], [0, 0, 0, 1, 1, 1], [0], [0]>} : vector<2x16x8xbf16>, vector<2x16x8xbf16>, vector<2x16x16xf32> -> vector<2x16x16xf32>
    "tpu.trace_stop"() : () -> ()
    %cst_20 = arith.constant dense<0xFF800000> : vector<2x16xf32>
    %47 = vector.multi_reduction <maximumf>, %46, %cst_20 [2] : vector<2x16x16xf32> to vector<2x16xf32>
    %48 = vector.shape_cast %47 : vector<2x16xf32> to vector<2x16x1xf32>
    %49 = vector.broadcast %48 : vector<2x16x1xf32> to vector<2x16x16xf32>
    %50 = arith.subf %46, %49 : vector<2x16x16xf32>
    %51 = math.exp %50 : vector<2x16x16xf32>
    %cst_21 = arith.constant dense<0.000000e+00> : vector<2x16xf32>
    %52 = vector.multi_reduction <add>, %51, %cst_21 [2] : vector<2x16x16xf32> to vector<2x16xf32>
    %53 = vector.shape_cast %52 : vector<2x16xf32> to vector<2x16x1xf32>
    %54 = tpu.reciprocal %53 {approx = true} : vector<2x16x1xf32> -> vector<2x16x1xf32>
    %55 = vector.broadcast %54 : vector<2x16x1xf32> to vector<2x16x16xf32>
    %56 = arith.mulf %51, %55 : vector<2x16x16xf32>
    %57 = arith.truncf %56 : vector<2x16x16xf32> to vector<2x16x16xbf16>
    %58 = arith.truncf %43 : vector<2x16x8xf32> to vector<2x16x8xbf16>
    "tpu.trace_start"() <{level = 10 : i32, message = "bqk,bkd->bqd"}> : () -> ()
    %cst_22 = arith.constant dense<0.000000e+00> : vector<2x16x8xf32>
    %59 = tpu.matmul %57, %58, %cst_22 {dimension_numbers = #tpu.dot_dimension_numbers<[2], [1], [1], [2], [0, 0, 0, 1, 1, 2], [0], [0]>} : vector<2x16x16xbf16>, vector<2x16x8xbf16>, vector<2x16x8xf32> -> vector<2x16x8xf32>
    "tpu.trace_stop"() : () -> ()
    %60 = vector.shape_cast %59 : vector<2x16x8xf32> to vector<32x8xf32>
    %61 = vector.extract_strided_slice %37 {offsets = [0, 8], sizes = [32, 8], strides = [1, 1]} : vector<32x96xf32> to vector<32x8xf32>
    %62 = vector.shape_cast %61 : vector<32x8xf32> to vector<2x16x8xf32>
    %63 = vector.extract_strided_slice %37 {offsets = [0, 40], sizes = [32, 8], strides = [1, 1]} : vector<32x96xf32> to vector<32x8xf32>
    %64 = vector.shape_cast %63 : vector<32x8xf32> to vector<2x16x8xf32>
    %65 = vector.extract_strided_slice %37 {offsets = [0, 72], sizes = [32, 8], strides = [1, 1]} : vector<32x96xf32> to vector<32x8xf32>
    %66 = vector.shape_cast %65 : vector<32x8xf32> to vector<2x16x8xf32>
    %67 = arith.truncf %62 : vector<2x16x8xf32> to vector<2x16x8xbf16>
    %68 = arith.truncf %64 : vector<2x16x8xf32> to vector<2x16x8xbf16>
    "tpu.trace_start"() <{level = 10 : i32, message = "bqd,bkd->bqk"}> : () -> ()
    %cst_23 = arith.constant dense<0.000000e+00> : vector<2x16x16xf32>
    %69 = tpu.matmul %67, %68, %cst_23 {dimension_numbers = #tpu.dot_dimension_numbers<[2], [2], [1], [1], [0, 0, 0, 1, 1, 1], [0], [0]>} : vector<2x16x8xbf16>, vector<2x16x8xbf16>, vector<2x16x16xf32> -> vector<2x16x16xf32>
    "tpu.trace_stop"() : () -> ()
    %cst_24 = arith.constant dense<0xFF800000> : vector<2x16xf32>
    %70 = vector.multi_reduction <maximumf>, %69, %cst_24 [2] : vector<2x16x16xf32> to vector<2x16xf32>
    %71 = vector.shape_cast %70 : vector<2x16xf32> to vector<2x16x1xf32>
    %72 = vector.broadcast %71 : vector<2x16x1xf32> to vector<2x16x16xf32>
    %73 = arith.subf %69, %72 : vector<2x16x16xf32>
    %74 = math.exp %73 : vector<2x16x16xf32>
    %cst_25 = arith.constant dense<0.000000e+00> : vector<2x16xf32>
    %75 = vector.multi_reduction <add>, %74, %cst_25 [2] : vector<2x16x16xf32> to vector<2x16xf32>
    %76 = vector.shape_cast %75 : vector<2x16xf32> to vector<2x16x1xf32>
    %77 = tpu.reciprocal %76 {approx = true} : vector<2x16x1xf32> -> vector<2x16x1xf32>
    %78 = vector.broadcast %77 : vector<2x16x1xf32> to vector<2x16x16xf32>
    %79 = arith.mulf %74, %78 : vector<2x16x16xf32>
    %80 = arith.truncf %79 : vector<2x16x16xf32> to vector<2x16x16xbf16>
    %81 = arith.truncf %66 : vector<2x16x8xf32> to vector<2x16x8xbf16>
    "tpu.trace_start"() <{level = 10 : i32, message = "bqk,bkd->bqd"}> : () -> ()
    %cst_26 = arith.constant dense<0.000000e+00> : vector<2x16x8xf32>
    %82 = tpu.matmul %80, %81, %cst_26 {dimension_numbers = #tpu.dot_dimension_numbers<[2], [1], [1], [2], [0, 0, 0, 1, 1, 2], [0], [0]>} : vector<2x16x16xbf16>, vector<2x16x8xbf16>, vector<2x16x8xf32> -> vector<2x16x8xf32>
    "tpu.trace_stop"() : () -> ()
    %83 = vector.shape_cast %82 : vector<2x16x8xf32> to vector<32x8xf32>
    %84 = vector.extract_strided_slice %37 {offsets = [0, 16], sizes = [32, 8], strides = [1, 1]} : vector<32x96xf32> to vector<32x8xf32>
    %85 = vector.shape_cast %84 : vector<32x8xf32> to vector<2x16x8xf32>
    %86 = vector.extract_strided_slice %37 {offsets = [0, 48], sizes = [32, 8], strides = [1, 1]} : vector<32x96xf32> to vector<32x8xf32>
    %87 = vector.shape_cast %86 : vector<32x8xf32> to vector<2x16x8xf32>
    %88 = vector.extract_strided_slice %37 {offsets = [0, 80], sizes = [32, 8], strides = [1, 1]} : vector<32x96xf32> to vector<32x8xf32>
    %89 = vector.shape_cast %88 : vector<32x8xf32> to vector<2x16x8xf32>
    %90 = arith.truncf %85 : vector<2x16x8xf32> to vector<2x16x8xbf16>
    %91 = arith.truncf %87 : vector<2x16x8xf32> to vector<2x16x8xbf16>
    "tpu.trace_start"() <{level = 10 : i32, message = "bqd,bkd->bqk"}> : () -> ()
    %cst_27 = arith.constant dense<0.000000e+00> : vector<2x16x16xf32>
    %92 = tpu.matmul %90, %91, %cst_27 {dimension_numbers = #tpu.dot_dimension_numbers<[2], [2], [1], [1], [0, 0, 0, 1, 1, 1], [0], [0]>} : vector<2x16x8xbf16>, vector<2x16x8xbf16>, vector<2x16x16xf32> -> vector<2x16x16xf32>
    "tpu.trace_stop"() : () -> ()
    %cst_28 = arith.constant dense<0xFF800000> : vector<2x16xf32>
    %93 = vector.multi_reduction <maximumf>, %92, %cst_28 [2] : vector<2x16x16xf32> to vector<2x16xf32>
    %94 = vector.shape_cast %93 : vector<2x16xf32> to vector<2x16x1xf32>
    %95 = vector.broadcast %94 : vector<2x16x1xf32> to vector<2x16x16xf32>
    %96 = arith.subf %92, %95 : vector<2x16x16xf32>
    %97 = math.exp %96 : vector<2x16x16xf32>
    %cst_29 = arith.constant dense<0.000000e+00> : vector<2x16xf32>
    %98 = vector.multi_reduction <add>, %97, %cst_29 [2] : vector<2x16x16xf32> to vector<2x16xf32>
    %99 = vector.shape_cast %98 : vector<2x16xf32> to vector<2x16x1xf32>
    %100 = tpu.reciprocal %99 {approx = true} : vector<2x16x1xf32> -> vector<2x16x1xf32>
    %101 = vector.broadcast %100 : vector<2x16x1xf32> to vector<2x16x16xf32>
    %102 = arith.mulf %97, %101 : vector<2x16x16xf32>
    %103 = arith.truncf %102 : vector<2x16x16xf32> to vector<2x16x16xbf16>
    %104 = arith.truncf %89 : vector<2x16x8xf32> to vector<2x16x8xbf16>
    "tpu.trace_start"() <{level = 10 : i32, message = "bqk,bkd->bqd"}> : () -> ()
    %cst_30 = arith.constant dense<0.000000e+00> : vector<2x16x8xf32>
    %105 = tpu.matmul %103, %104, %cst_30 {dimension_numbers = #tpu.dot_dimension_numbers<[2], [1], [1], [2], [0, 0, 0, 1, 1, 2], [0], [0]>} : vector<2x16x16xbf16>, vector<2x16x8xbf16>, vector<2x16x8xf32> -> vector<2x16x8xf32>
    "tpu.trace_stop"() : () -> ()
    %106 = vector.shape_cast %105 : vector<2x16x8xf32> to vector<32x8xf32>
    %107 = vector.extract_strided_slice %37 {offsets = [0, 24], sizes = [32, 8], strides = [1, 1]} : vector<32x96xf32> to vector<32x8xf32>
    %108 = vector.shape_cast %107 : vector<32x8xf32> to vector<2x16x8xf32>
    %109 = vector.extract_strided_slice %37 {offsets = [0, 56], sizes = [32, 8], strides = [1, 1]} : vector<32x96xf32> to vector<32x8xf32>
    %110 = vector.shape_cast %109 : vector<32x8xf32> to vector<2x16x8xf32>
    %111 = vector.extract_strided_slice %37 {offsets = [0, 88], sizes = [32, 8], strides = [1, 1]} : vector<32x96xf32> to vector<32x8xf32>
    %112 = vector.shape_cast %111 : vector<32x8xf32> to vector<2x16x8xf32>
    %113 = arith.truncf %108 : vector<2x16x8xf32> to vector<2x16x8xbf16>
    %114 = arith.truncf %110 : vector<2x16x8xf32> to vector<2x16x8xbf16>
    "tpu.trace_start"() <{level = 10 : i32, message = "bqd,bkd->bqk"}> : () -> ()
    %cst_31 = arith.constant dense<0.000000e+00> : vector<2x16x16xf32>
    %115 = tpu.matmul %113, %114, %cst_31 {dimension_numbers = #tpu.dot_dimension_numbers<[2], [2], [1], [1], [0, 0, 0, 1, 1, 1], [0], [0]>} : vector<2x16x8xbf16>, vector<2x16x8xbf16>, vector<2x16x16xf32> -> vector<2x16x16xf32>
    "tpu.trace_stop"() : () -> ()
    %cst_32 = arith.constant dense<0xFF800000> : vector<2x16xf32>
    %116 = vector.multi_reduction <maximumf>, %115, %cst_32 [2] : vector<2x16x16xf32> to vector<2x16xf32>
    %117 = vector.shape_cast %116 : vector<2x16xf32> to vector<2x16x1xf32>
    %118 = vector.broadcast %117 : vector<2x16x1xf32> to vector<2x16x16xf32>
    %119 = arith.subf %115, %118 : vector<2x16x16xf32>
    %120 = math.exp %119 : vector<2x16x16xf32>
    %cst_33 = arith.constant dense<0.000000e+00> : vector<2x16xf32>
    %121 = vector.multi_reduction <add>, %120, %cst_33 [2] : vector<2x16x16xf32> to vector<2x16xf32>
    %122 = vector.shape_cast %121 : vector<2x16xf32> to vector<2x16x1xf32>
    %123 = tpu.reciprocal %122 {approx = true} : vector<2x16x1xf32> -> vector<2x16x1xf32>
    %124 = vector.broadcast %123 : vector<2x16x1xf32> to vector<2x16x16xf32>
    %125 = arith.mulf %120, %124 : vector<2x16x16xf32>
    %126 = arith.truncf %125 : vector<2x16x16xf32> to vector<2x16x16xbf16>
    %127 = arith.truncf %112 : vector<2x16x8xf32> to vector<2x16x8xbf16>
    "tpu.trace_start"() <{level = 10 : i32, message = "bqk,bkd->bqd"}> : () -> ()
    %cst_34 = arith.constant dense<0.000000e+00> : vector<2x16x8xf32>
    %128 = tpu.matmul %126, %127, %cst_34 {dimension_numbers = #tpu.dot_dimension_numbers<[2], [1], [1], [2], [0, 0, 0, 1, 1, 2], [0], [0]>} : vector<2x16x16xbf16>, vector<2x16x8xbf16>, vector<2x16x8xf32> -> vector<2x16x8xf32>
    "tpu.trace_stop"() : () -> ()
    %129 = vector.shape_cast %128 : vector<2x16x8xf32> to vector<32x8xf32>
    %130 = tpu.concatenate %60, %83, %106, %129 in 1 : vector<32x8xf32>, vector<32x8xf32>, vector<32x8xf32>, vector<32x8xf32> -> vector<32x32xf32>
    %131 = arith.truncf %130 : vector<32x32xf32> to vector<32x32xbf16>
    %c0_35 = arith.constant 0 : index
    %c0_36 = arith.constant 0 : index
    %c0_37 = arith.constant 0 : index
    %132 = vector.load %arg6[%c0_35, %c0_36, %c0_37] : memref<1x32x32xbf16, #tpu.memory_space<vmem>>, vector<1x32x32xbf16>
    %133 = vector.shape_cast %132 : vector<1x32x32xbf16> to vector<32x32xbf16>
    %cst_38 = arith.constant dense<0.000000e+00> : vector<32x32xf32>
    %134 = tpu.matmul %131, %133, %cst_38 {dimension_numbers = #tpu.dot_dimension_numbers<[1], [0], [0], [1], [0, 0, 1, 1], [], []>} : vector<32x32xbf16>, vector<32x32xbf16>, vector<32x32xf32> -> vector<32x32xf32>
    %c0_39 = arith.constant 0 : index
    %c0_40 = arith.constant 0 : index
    %c0_41 = arith.constant 0 : index
    %135 = vector.load %arg7[%c0_39, %c0_40, %c0_41] : memref<1x1x32xf32, #tpu.memory_space<vmem>>, vector<1x1x32xf32>
    %136 = vector.shape_cast %135 : vector<1x1x32xf32> to vector<1x32xf32>
    %137 = vector.broadcast %136 : vector<1x32xf32> to vector<32x32xf32>
    %138 = arith.addf %134, %137 : vector<32x32xf32>
    %139 = arith.addf %3, %138 : vector<32x32xf32>
    %c0_42 = arith.constant 0 : index
    %c0_43 = arith.constant 0 : index
    %c0_44 = arith.constant 0 : index
    %140 = vector.load %arg8[%c0_42, %c0_43, %c0_44] : memref<1x1x32xf32, #tpu.memory_space<vmem>>, vector<1x1x32xf32>
    %141 = vector.shape_cast %140 : vector<1x1x32xf32> to vector<1x32xf32>
    %c0_45 = arith.constant 0 : index
    %c0_46 = arith.constant 0 : index
    %c0_47 = arith.constant 0 : index
    %142 = vector.load %arg9[%c0_45, %c0_46, %c0_47] : memref<1x1x32xf32, #tpu.memory_space<vmem>>, vector<1x1x32xf32>
    %143 = vector.shape_cast %142 : vector<1x1x32xf32> to vector<1x32xf32>
    %cst_48 = arith.constant dense<0.000000e+00> : vector<32xf32>
    %144 = vector.multi_reduction <add>, %139, %cst_48 [1] : vector<32x32xf32> to vector<32xf32>
    %145 = vector.shape_cast %144 : vector<32xf32> to vector<32x1xf32>
    %cst_49 = arith.constant 3.200000e+01 : f32
    %146 = vector.broadcast %cst_49 : f32 to vector<32x1xf32>
    %147 = arith.divf %145, %146 : vector<32x1xf32>
    %148 = vector.broadcast %147 : vector<32x1xf32> to vector<32x32xf32>
    %149 = arith.subf %139, %148 : vector<32x32xf32>
    %150 = arith.mulf %149, %149 : vector<32x32xf32>
    %cst_50 = arith.constant dense<0.000000e+00> : vector<32xf32>
    %151 = vector.multi_reduction <add>, %150, %cst_50 [1] : vector<32x32xf32> to vector<32xf32>
    %152 = vector.shape_cast %151 : vector<32xf32> to vector<32x1xf32>
    %cst_51 = arith.constant 3.200000e+01 : f32
    %153 = vector.broadcast %cst_51 : f32 to vector<32x1xf32>
    %154 = arith.divf %152, %153 : vector<32x1xf32>
    %155 = vector.broadcast %147 : vector<32x1xf32> to vector<32x32xf32>
    %156 = arith.subf %139, %155 : vector<32x32xf32>
    %cst_52 = arith.constant 9.99999974E-6 : f32
    %157 = vector.broadcast %cst_52 : f32 to vector<32x1xf32>
    %158 = arith.addf %154, %157 : vector<32x1xf32>
    %159 = math.rsqrt %158 : vector<32x1xf32>
    %160 = vector.broadcast %159 : vector<32x1xf32> to vector<32x32xf32>
    %161 = arith.mulf %156, %160 : vector<32x32xf32>
    %162 = vector.broadcast %141 : vector<1x32xf32> to vector<32x32xf32>
    %163 = arith.mulf %161, %162 : vector<32x32xf32>
    %164 = vector.broadcast %143 : vector<1x32xf32> to vector<32x32xf32>
    %165 = arith.addf %163, %164 : vector<32x32xf32>
    %166 = arith.truncf %165 : vector<32x32xf32> to vector<32x32xbf16>
    %c0_53 = arith.constant 0 : index
    %c0_54 = arith.constant 0 : index
    %c0_55 = arith.constant 0 : index
    %167 = vector.load %arg10[%c0_53, %c0_54, %c0_55] : memref<1x32x64xbf16, #tpu.memory_space<vmem>>, vector<1x32x64xbf16>
    %168 = vector.shape_cast %167 : vector<1x32x64xbf16> to vector<32x64xbf16>
    %cst_56 = arith.constant dense<0.000000e+00> : vector<32x64xf32>
    %169 = tpu.matmul %166, %168, %cst_56 {dimension_numbers = #tpu.dot_dimension_numbers<[1], [0], [0], [1], [0, 0, 1, 1], [], []>} : vector<32x32xbf16>, vector<32x64xbf16>, vector<32x64xf32> -> vector<32x64xf32>
    %c0_57 = arith.constant 0 : index
    %c0_58 = arith.constant 0 : index
    %c0_59 = arith.constant 0 : index
    %170 = vector.load %arg11[%c0_57, %c0_58, %c0_59] : memref<1x1x64xf32, #tpu.memory_space<vmem>>, vector<1x1x64xf32>
    %171 = vector.shape_cast %170 : vector<1x1x64xf32> to vector<1x64xf32>
    %172 = vector.broadcast %171 : vector<1x64xf32> to vector<32x64xf32>
    %173 = arith.addf %169, %172 : vector<32x64xf32>
    %cst_60 = arith.constant 5.000000e-01 : f32
    %174 = vector.broadcast %cst_60 : f32 to vector<32x64xf32>
    %175 = arith.mulf %174, %173 : vector<32x64xf32>
    %cst_61 = arith.constant 1.41421354 : f32
    %176 = vector.broadcast %cst_61 : f32 to vector<32x64xf32>
    %177 = arith.divf %173, %176 : vector<32x64xf32>
    %178 = math.erf %177 : vector<32x64xf32>
    %cst_62 = arith.constant 1.000000e+00 : f32
    %179 = vector.broadcast %cst_62 : f32 to vector<32x64xf32>
    %180 = arith.addf %179, %178 : vector<32x64xf32>
    %181 = arith.mulf %175, %180 : vector<32x64xf32>
    %182 = arith.truncf %181 : vector<32x64xf32> to vector<32x64xbf16>
    %c0_63 = arith.constant 0 : index
    %c0_64 = arith.constant 0 : index
    %c0_65 = arith.constant 0 : index
    %183 = vector.load %arg12[%c0_63, %c0_64, %c0_65] : memref<1x64x32xbf16, #tpu.memory_space<vmem>>, vector<1x64x32xbf16>
    %184 = vector.shape_cast %183 : vector<1x64x32xbf16> to vector<64x32xbf16>
    %cst_66 = arith.constant dense<0.000000e+00> : vector<32x32xf32>
    %185 = tpu.matmul %182, %184, %cst_66 {dimension_numbers = #tpu.dot_dimension_numbers<[1], [0], [0], [1], [0, 0, 1, 1], [], []>} : vector<32x64xbf16>, vector<64x32xbf16>, vector<32x32xf32> -> vector<32x32xf32>
    %c0_67 = arith.constant 0 : index
    %c0_68 = arith.constant 0 : index
    %c0_69 = arith.constant 0 : index
    %186 = vector.load %arg13[%c0_67, %c0_68, %c0_69] : memref<1x1x32xf32, #tpu.memory_space<vmem>>, vector<1x1x32xf32>
    %187 = vector.shape_cast %186 : vector<1x1x32xf32> to vector<1x32xf32>
    %188 = vector.broadcast %187 : vector<1x32xf32> to vector<32x32xf32>
    %189 = arith.addf %185, %188 : vector<32x32xf32>
    %190 = arith.addf %139, %189 : vector<32x32xf32>
    %c1_i32 = arith.constant 1 : i32
    %191 = arith.cmpi slt, %arg0, %c1_i32 : i32
    %192 = arith.extui %191 : i1 to i32
    %c0_i32_70 = arith.constant 0 : i32
    %193 = arith.cmpi ne, %192, %c0_i32_70 : i32
    scf.if %193 {
      %c0_73 = arith.constant 0 : index
      %c0_74 = arith.constant 0 : index
      %197 = vector.load %arg16[%c0_73, %c0_74] : memref<32x32xf32, #tpu.memory_space<vmem>>, vector<32x32xf32>
      tpu.vector_store %arg16[%c0_73, %c0_74], %190 {strides = array<i32>} : memref<32x32xf32, #tpu.memory_space<vmem>>, vector<32x32xf32>,
    } else {
    }
    %c1_i32_71 = arith.constant 1 : i32
    %194 = arith.cmpi eq, %arg0, %c1_i32_71 : i32
    %195 = arith.extui %194 : i1 to i32
    %c0_i32_72 = arith.constant 0 : i32
    %196 = arith.cmpi ne, %195, %c0_i32_72 : i32
    scf.if %196 {
      %c0_73 = arith.constant 0 : index
      %c0_74 = arith.constant 0 : index
      %197 = vector.load %arg14[%c0_73, %c0_74] : memref<1x32xf32, #tpu.memory_space<vmem>>, vector<1x32xf32>
      %c0_75 = arith.constant 0 : index
      %c0_76 = arith.constant 0 : index
      %198 = vector.load %arg15[%c0_75, %c0_76] : memref<1x32xf32, #tpu.memory_space<vmem>>, vector<1x32xf32>
      %cst_77 = arith.constant dense<0.000000e+00> : vector<32xf32>
      %199 = vector.multi_reduction <add>, %190, %cst_77 [1] : vector<32x32xf32> to vector<32xf32>
      %200 = vector.shape_cast %199 : vector<32xf32> to vector<32x1xf32>
      %cst_78 = arith.constant 3.200000e+01 : f32
      %201 = vector.broadcast %cst_78 : f32 to vector<32x1xf32>
      %202 = arith.divf %200, %201 : vector<32x1xf32>
      %203 = vector.broadcast %202 : vector<32x1xf32> to vector<32x32xf32>
      %204 = arith.subf %190, %203 : vector<32x32xf32>
      %205 = arith.mulf %204, %204 : vector<32x32xf32>
      %cst_79 = arith.constant dense<0.000000e+00> : vector<32xf32>
      %206 = vector.multi_reduction <add>, %205, %cst_79 [1] : vector<32x32xf32> to vector<32xf32>
      %207 = vector.shape_cast %206 : vector<32xf32> to vector<32x1xf32>
      %cst_80 = arith.constant 3.200000e+01 : f32
      %208 = vector.broadcast %cst_80 : f32 to vector<32x1xf32>
      %209 = arith.divf %207, %208 : vector<32x1xf32>
      %210 = vector.broadcast %202 : vector<32x1xf32> to vector<32x32xf32>
      %211 = arith.subf %190, %210 : vector<32x32xf32>
      %cst_81 = arith.constant 9.99999974E-6 : f32
      %212 = vector.broadcast %cst_81 : f32 to vector<32x1xf32>
      %213 = arith.addf %209, %212 : vector<32x1xf32>
      %214 = math.rsqrt %213 : vector<32x1xf32>
      %215 = vector.broadcast %214 : vector<32x1xf32> to vector<32x32xf32>
      %216 = arith.mulf %211, %215 : vector<32x32xf32>
      %217 = vector.broadcast %197 : vector<1x32xf32> to vector<32x32xf32>
      %218 = arith.mulf %216, %217 : vector<32x32xf32>
      %219 = vector.broadcast %198 : vector<1x32xf32> to vector<32x32xf32>
      %220 = arith.addf %218, %219 : vector<32x32xf32>
      %c0_82 = arith.constant 0 : index
      %c0_83 = arith.constant 0 : index
      %221 = vector.load %arg16[%c0_82, %c0_83] : memref<32x32xf32, #tpu.memory_space<vmem>>, vector<32x32xf32>
      tpu.vector_store %arg16[%c0_82, %c0_83], %220 {strides = array<i32>} : memref<32x32xf32, #tpu.memory_space<vmem>>, vector<32x32xf32>,
    } else {
    }
    return
  }
  func.func @transform_0(%arg0: i32) -> (i32, i32) {
    %c0_i32 = arith.constant 0 : i32
    %c0_i32_0 = arith.constant 0 : i32
    %c0_i32_1 = arith.constant 0 : i32
    return %c0_i32, %c0_i32_0 : i32, i32
  }
  func.func @transform_1(%arg0: i32) -> (i32, i32, i32) {
    %c0_i32 = arith.constant 0 : i32
    %c0_i32_0 = arith.constant 0 : i32
    %c0_i32_1 = arith.constant 0 : i32
    return %arg0, %c0_i32, %c0_i32_0 : i32, i32, i32
  }
  func.func @transform_2(%arg0: i32) -> (i32, i32, i32) {
    %c0_i32 = arith.constant 0 : i32
    %c0_i32_0 = arith.constant 0 : i32
    %c0_i32_1 = arith.constant 0 : i32
    return %arg0, %c0_i32, %c0_i32_0 : i32, i32, i32
  }
  func.func @transform_3(%arg0: i32) -> (i32, i32, i32) {
    %c0_i32 = arith.constant 0 : i32
    %c0_i32_0 = arith.constant 0 : i32
    %c0_i32_1 = arith.constant 0 : i32
    return %arg0, %c0_i32, %c0_i32_0 : i32, i32, i32
  }
  func.func @transform_4(%arg0: i32) -> (i32, i32, i32) {
    %c0_i32 = arith.constant 0 : i32
    %c0_i32_0 = arith.constant 0 : i32
    %c0_i32_1 = arith.constant 0 : i32
    return %arg0, %c0_i32, %c0_i32_0 : i32, i32, i32
  }
  func.func @transform_5(%arg0: i32) -> (i32, i32, i32) {
    %c0_i32 = arith.constant 0 : i32
    %c0_i32_0 = arith.constant 0 : i32
    %c0_i32_1 = arith.constant 0 : i32
    return %arg0, %c0_i32, %c0_i32_0 : i32, i32, i32
  }
  func.func @transform_6(%arg0: i32) -> (i32, i32, i32) {
    %c0_i32 = arith.constant 0 : i32
    %c0_i32_0 = arith.constant 0 : i32
    %c0_i32_1 = arith.constant 0 : i32
    return %arg0, %c0_i32, %c0_i32_0 : i32, i32, i32
  }
  func.func @transform_7(%arg0: i32) -> (i32, i32, i32) {
    %c0_i32 = arith.constant 0 : i32
    %c0_i32_0 = arith.constant 0 : i32
    %c0_i32_1 = arith.constant 0 : i32
    return %arg0, %c0_i32, %c0_i32_0 : i32, i32, i32
  }
  func.func @transform_8(%arg0: i32) -> (i32, i32, i32) {
    %c0_i32 = arith.constant 0 : i32
    %c0_i32_0 = arith.constant 0 : i32
    %c0_i32_1 = arith.constant 0 : i32
    return %arg0, %c0_i32, %c0_i32_0 : i32, i32, i32
  }
  func.func @transform_9(%arg0: i32) -> (i32, i32, i32) {
    %c0_i32 = arith.constant 0 : i32
    %c0_i32_0 = arith.constant 0 : i32
    %c0_i32_1 = arith.constant 0 : i32
    return %arg0, %c0_i32, %c0_i32_0 : i32, i32, i32
  }
  func.func @transform_10(%arg0: i32) -> (i32, i32, i32) {
    %c0_i32 = arith.constant 0 : i32
    %c0_i32_0 = arith.constant 0 : i32
    %c0_i32_1 = arith.constant 0 : i32
    return %arg0, %c0_i32, %c0_i32_0 : i32, i32, i32
  }
  func.func @transform_11(%arg0: i32) -> (i32, i32, i32) {
    %c0_i32 = arith.constant 0 : i32
    %c0_i32_0 = arith.constant 0 : i32
    %c0_i32_1 = arith.constant 0 : i32
    return %arg0, %c0_i32, %c0_i32_0 : i32, i32, i32
  }
  func.func @transform_12(%arg0: i32) -> (i32, i32, i32) {
    %c0_i32 = arith.constant 0 : i32
    %c0_i32_0 = arith.constant 0 : i32
    %c0_i32_1 = arith.constant 0 : i32
    return %arg0, %c0_i32, %c0_i32_0 : i32, i32, i32
  }
  func.func @transform_13(%arg0: i32) -> (i32, i32) {
    %c0_i32 = arith.constant 0 : i32
    %c0_i32_0 = arith.constant 0 : i32
    %c0_i32_1 = arith.constant 0 : i32
    return %c0_i32, %c0_i32_0 : i32, i32
  }
  func.func @transform_14(%arg0: i32) -> (i32, i32) {
    %c0_i32 = arith.constant 0 : i32
    %c0_i32_0 = arith.constant 0 : i32
    %c0_i32_1 = arith.constant 0 : i32
    return %c0_i32, %c0_i32_0 : i32, i32
  }
  func.func @transform_15(%arg0: i32) -> (i32, i32) {
    %c0_i32 = arith.constant 0 : i32
    %c0_i32_0 = arith.constant 0 : i32
    %c0_i32_1 = arith.constant 0 : i32
    return %c0_i32, %c0_i32_0 : i32, i32
  }
}

</mosaic_0001>

<llo_original>
// kernel: vit_forward.2
$region0: #{vit_forward.2}
  #allocation0 [shape = 'u32[]', space=smem, size = 0x4, offset = 0x4, fixed_abs, tag = 'smem constant byte address 0x4 - core index']
  #allocation1 [shape = 'u32[144,128]{1,0:T(1,128)}', space=vmem, size = 0x12000, scoped, tag = 'internal scratch']
  %s0 = inlined_call_operand.vmem [shape: bf16[32,48], index: 0, kind: input, shape index: {}]
  %s1 = inlined_call_operand.vmem [shape: bf16[48,32], index: 1, kind: input, shape index: {}]
  %s2 = inlined_call_operand.vmem [shape: f32[1,32], index: 2, kind: input, shape index: {}]
  %s3 = inlined_call_operand.vmem [shape: f32[32,32], index: 3, kind: input, shape index: {}]
  %s4 = inlined_call_operand.vmem [shape: f32[32,32], index: 4, kind: output, shape index: {}]
  %s5 = sld [smem:[#allocation0]]
  $region26: #{vit_forward.2} parent=0
    _
  %s7 = ssub.s32 1, %s5
  %s8 = scalar_select 0, %s7, %s5
  // Predicated region
  $region2: #{vit_forward.2} parent=0 // pred_check
    _
  $region3: #{vit_forward.2} parent=0 // pred_check_branch
    %10 = sbr.rel (0) target = $region5
  $region4: #{vit_forward.2} parent=0 // pred_region
    _
  $region5: #{vit_forward.2} parent=0 // pred_fallthru
    _
  // Predicated region
  $region6: #{vit_forward.2} parent=0 // pred_check
    _
  $region7: #{vit_forward.2} parent=0 // pred_check_branch
    %12 = sbr.rel (0) target = $region9
  $region8: #{vit_forward.2} parent=0 // pred_region
    _
  $region9: #{vit_forward.2} parent=0 // pred_fallthru
    _
  // Predicated region
  $region10: #{vit_forward.2} parent=0 // pred_check
    _
  $region11: #{vit_forward.2} parent=0 // pred_check_branch
    %14 = sbr.rel (0) target = $region13
  $region12: #{vit_forward.2} parent=0 // pred_region
    _
  $region13: #{vit_forward.2} parent=0 // pred_fallthru
    _
  // Predicated region
  $region14: #{vit_forward.2} parent=0 // pred_check
    _
  $region15: #{vit_forward.2} parent=0 // pred_check_branch
    %16 = sbr.rel (0) target = $region17
  $region16: #{vit_forward.2} parent=0 // pred_region
    _
  $region17: #{vit_forward.2} parent=0 // pred_fallthru
    _
  %v18 = vld [vmem:[%s0] sm:$0xf]
  %v19 = vld [vmem:[%s0 + $0x4] sm:$0xf]
  %v20 = vld [vmem:[%s0 + $0x8] sm:$0xf]
  %v21 = vld [vmem:[%s0 + $0xc] sm:$0xf]
  %v22 = vld [vmem:[%s1] sm:$0xf]
  %v23 = vld [vmem:[%s1 + $0x4] sm:$0xf]
  %v24 = vld [vmem:[%s1 + $0x8] sm:$0xf]
  %v25 = vld [vmem:[%s1 + $0xc] sm:$0xf]
  %v26 = vld [vmem:[%s1 + $0x10] sm:$0xf]
  %v27 = vld [vmem:[%s1 + $0x14] sm:$0xf]
  %v28 = vld [vmem:[%s2] sm:$0x1]
  %v30 = vlaneseq
  %v31 = vshrl.u32 %v30, 7
  %v32 = vsub.s32 0, %v31
  %v33 = vrot.slane %v28, %v32
  %v39 = vunpack.c.l.b16 %v18
  %v40 = vunpack.c.l.b16 %v19
  %v41 = vunpack.c.l.b16 %v20
  %v42 = vunpack.c.l.b16 %v21
  %v43 = vpack.c.b16 %v40, %v39
  %v44 = vpack.c.b16 %v42, %v41
  %v51 = vunpack.c.l.b16 %v22
  %v52 = vunpack.c.l.b16 %v23
  %v53 = vunpack.c.l.b16 %v24
  %v54 = vunpack.c.l.b16 %v25
  %v55 = vunpack.c.l.b16 %v26
  %v56 = vunpack.c.l.b16 %v27
  %v57 = vpack.c.b16 %v52, %v51
  %v58 = vpack.c.b16 %v54, %v53
  %v59 = vpack.c.b16 %v56, %v55
  %vm63 = vcmask 392192
  %v65 = vsel %vm63, %v43, 0
  %v68 = vsel %vm63, %v44, 0
  %70 = vmatprep.subr.bf16.mxu0 0
  %71 = vmatpush1.bf16.msra.mxu0 %v57
  %72 = vmatprep.subr.bf16.mxu0 0
  %73 = vmatpush1.bf16.msra.mxu0 %v58
  %74 = vmatprep.subr.bf16.mxu0 0
  %75 = vmatpush1.bf16.msra.mxu0 %v59
  %76 = vmatprep.subr.bf16.mxu0 0
  %77 = vmatpush1.bf16.msra.mxu0 0
  %78 = vmatprep.subr.bf16.mxu0 0
  %79 = vmatpush1.bf16.msra.mxu0 0
  %80 = vmatprep.subr.bf16.mxu0 0
  %81 = vmatpush1.bf16.msra.mxu0 0
  %82 = vmatprep.subr.bf16.mxu0 0
  %83 = vmatpush1.bf16.msra.mxu0 0
  %84 = vmatprep.subr.bf16.mxu0 0
  %85 = vmatpush1.bf16.msra.mxu0 0
  %86 = vmatprep.subr.bf16.mxu0 0
  %87 = vmatpush1.bf16.msra.mxu0 0
  %88 = vmatprep.subr.bf16.mxu0 0
  %89 = vmatpush1.bf16.msra.mxu0 0
  %90 = vmatprep.subr.bf16.mxu0 0
  %91 = vmatpush1.bf16.msra.mxu0 0
  %92 = vmatprep.subr.bf16.mxu0 0
  %93 = vmatpush1.bf16.msra.mxu0 0
  %94 = vmatprep.subr.bf16.mxu0 0
  %95 = vmatpush1.bf16.msra.mxu0 0
  %96 = vmatprep.subr.bf16.mxu0 0
  %97 = vmatpush1.bf16.msra.mxu0 0
  %98 = vmatprep.subr.bf16.mxu0 0
  %99 = vmatpush1.bf16.msra.mxu0 0
  %100 = vmatprep.subr.bf16.mxu0 0
  %101 = vmatpush1.bf16.msra.mxu0 0
  %102 = vmatprep.mubr.bf16.mxu0 0
  %103 = vmatmul.mubr.bf16.gmra.mrb[0].mxu0 %v65
  %v104 = vpop.f32.mrb[0].mxu0
  %v105 = vadd.f32 %v33, %v104
  %v106 = vpop.f32.mrb[0].mxu0
  %v107 = vpop.f32.mrb[0].mxu0
  %v108 = vadd.f32 %v33, %v107
  %v109 = vpop.f32.mrb[0].mxu0
  %110 = vmatprep.mubr.bf16.mxu0 0
  %111 = vmatmul.mubr.bf16.gmra.mrb[0].mxu0 %v68
  %v112 = vpop.f32.mrb[0].mxu0
  %v113 = vadd.f32 %v33, %v112
  %v114 = vpop.f32.mrb[0].mxu0
  %v115 = vpop.f32.mrb[0].mxu0
  %v116 = vadd.f32 %v33, %v115
  %v117 = vpop.f32.mrb[0].mxu0
  %118 = vdwg.mxu0
  %v119 = vld [vmem:[%s3] sm:$0xff]
  %v120 = vld [vmem:[%s3 + $0x8] sm:$0xff]
  %v121 = vld [vmem:[%s3 + $0x10] sm:$0xff]
  %v122 = vld [vmem:[%s3 + $0x18] sm:$0xff]
  %v123 = vadd.f32 %v105, %v119
  %v124 = vadd.f32 %v108, %v120
  %v125 = vadd.f32 %v113, %v121
  %v126 = vadd.f32 %v116, %v122
  %vm127 = vcmask 261120
  %128 = vst.msk [vmem:[%s4] sm:$0xff] %vm127, %v123
  %129 = vst.msk [vmem:[%s4 + $0x8] sm:$0xff] %vm127, %v124
  %130 = vst.msk [vmem:[%s4 + $0x10] sm:$0xff] %vm127, %v125
  %131 = vst.msk [vmem:[%s4 + $0x18] sm:$0xff] %vm127, %v126
  // Predicated region
  $region18: #{vit_forward.2} parent=0 // pred_check
    _
  $region19: #{vit_forward.2} parent=0 // pred_check_branch
    %133 = sbr.rel (0) target = $region21
  $region20: #{vit_forward.2} parent=0 // pred_region
    _
  $region21: #{vit_forward.2} parent=0 // pred_fallthru
    _
  // Predicated region
  $region22: #{vit_forward.2} parent=0 // pred_check
    _
  $region23: #{vit_forward.2} parent=0 // pred_check_branch
    %135 = sbr.rel (0) target = $region25
  $region24: #{vit_forward.2} parent=0 // pred_region
    _
  $region25: #{vit_forward.2} parent=0 // pred_fallthru
    _

// kernel: vit_forward.3
$region0: #{vit_forward.3}
  #allocation0 [shape = 'u32[]', space=smem, size = 0x4, offset = 0x4, fixed_abs, tag = 'smem constant byte address 0x4 - core index']
  #allocation1 [shape = 'u32[144,128]{1,0:T(1,128)}', space=vmem, size = 0x12000, scoped, tag = 'internal scratch']
  %s0 = inlined_call_operand.vmem [shape: f32[32,32], index: 0, kind: input, shape index: {}]
  %s1 = inlined_call_operand.vmem [shape: f32[2,1,32], index: 1, kind: input, shape index: {}]
  %s2 = inlined_call_operand.vmem [shape: f32[2,1,32], index: 2, kind: input, shape index: {}]
  %s3 = inlined_call_operand.vmem [shape: bf16[2,32,96], index: 3, kind: input, shape index: {}]
  %s4 = inlined_call_operand.vmem [shape: f32[2,1,96], index: 4, kind: input, shape index: {}]
  %s5 = inlined_call_operand.vmem [shape: bf16[2,32,32], index: 5, kind: input, shape index: {}]
  %s6 = inlined_call_operand.vmem [shape: f32[2,1,32], index: 6, kind: input, shape index: {}]
  %s7 = inlined_call_operand.vmem [shape: f32[2,1,32], index: 7, kind: input, shape index: {}]
  %s8 = inlined_call_operand.vmem [shape: f32[2,1,32], index: 8, kind: input, shape index: {}]
  %s9 = inlined_call_operand.vmem [shape: bf16[2,32,64], index: 9, kind: input, shape index: {}]
  %s10 = inlined_call_operand.vmem [shape: f32[2,1,64], index: 10, kind: input, shape index: {}]
  %s11 = inlined_call_operand.vmem [shape: bf16[2,64,32], index: 11, kind: input, shape index: {}]
  %s12 = inlined_call_operand.vmem [shape: f32[2,1,32], index: 12, kind: input, shape index: {}]
  %s13 = inlined_call_operand.vmem [shape: f32[1,32], index: 13, kind: input, shape index: {}]
  %s14 = inlined_call_operand.vmem [shape: f32[1,32], index: 14, kind: input, shape index: {}]
  %s15 = inlined_call_operand.hbm [shape: f32[32,32], index: 15, kind: output, shape index: {}]
  %s16 = sld [smem:[#allocation0]]
  $region105: #{vit_forward.3} parent=0
    _
  %s18 = ssub.s32 1, %s16
  %s19 = scalar_select 0, %s18, %s16
  $region1: #{vit_forward.3} parent=0
    #allocation2 [shape = 'u8[16384]{0}', space=vmem, size = 0x4000, scoped, tag = 'output window, operand 0, single buffered']
    #allocation3 [shape = 's32[2]{0}', space=sflag, size = 0x8, scoped, tag = 'scoped memory for vit_forward.3']
    %20 = vsyncpa [#allocation3], 0
    loop: start=0, step=1, limit=4
    $region2: #{vit_forward.3} parent=1 // loop_pre_header
      _
    $region3: #{vit_forward.3} parent=1 // loop_header
      %s22 = sphi 0, %s26
      %p23 = scmp.ge.s32.totalorder %s22, 4
      %s30 = sphi 0, %s30
      %s32 = sphi 0, %s30
      %s33 = sphi 0, %s32
      %s47 = sphi 0, %s33
      %s53 = sphi 0, %s55
      %s56 = sphi 0, %s53
      %s57 = sphi 0, %s56
      %s73 = sphi 0, %s57
      %s79 = sphi 0, %s81
      %s82 = sphi 0, %s79
      %s83 = sphi 0, %s82
      %s99 = sphi 0, %s83
      %s105 = sphi 0, %s107
      %s108 = sphi 0, %s105
      %s109 = sphi 0, %s108
      %s125 = sphi 0, %s109
      %s131 = sphi 0, %s133
      %s134 = sphi 0, %s131
      %s135 = sphi 0, %s134
      %s151 = sphi 0, %s135
      %s157 = sphi 0, %s159
      %s160 = sphi 0, %s157
      %s161 = sphi 0, %s160
      %s177 = sphi 0, %s161
      %s183 = sphi 0, %s185
      %s186 = sphi 0, %s183
      %s187 = sphi 0, %s186
      %s203 = sphi 0, %s187
      %s209 = sphi 0, %s211
      %s212 = sphi 0, %s209
      %s213 = sphi 0, %s212
      %s229 = sphi 0, %s213
      %s235 = sphi 0, %s237
      %s238 = sphi 0, %s235
      %s239 = sphi 0, %s238
      %s255 = sphi 0, %s239
      %s261 = sphi 0, %s263
      %s264 = sphi 0, %s261
      %s265 = sphi 0, %s264
      %s281 = sphi 0, %s265
      %s287 = sphi 0, %s289
      %s290 = sphi 0, %s287
      %s291 = sphi 0, %s290
      %s307 = sphi 0, %s291
      %s313 = sphi 0, %s315
      %s316 = sphi 0, %s313
      %s317 = sphi 0, %s316
      %s333 = sphi 0, %s317
      %s339 = sphi 0, %s341
      %s342 = sphi 0, %s339
      %s343 = sphi 0, %s342
      %s359 = sphi 0, %s343
      %s363 = sphi 0, %s363
      %s365 = sphi 0, %s363
      %s366 = sphi 0, %s365
      %s380 = sphi 0, %s366
      %s384 = sphi 0, %s384
      %s386 = sphi 0, %s384
      %s387 = sphi 0, %s386
      %s401 = sphi 0, %s387
      %s405 = sphi 0, %s405
      %s407 = sphi 0, %s405
      %s408 = sphi 0, %s407
      %s422 = sphi 0, %s408
    $region4: #{vit_forward.3} parent=1 // loop_header_branch
      %25 = sbr.rel (%p23) target = $region8
    $region5: #{vit_forward.3} parent=1 // loop_body
      %s27 = ssub.s32 %s22, 1
      %s28 = ssub.s32 %s22, 2
      %s29 = sadd.s32 %s22, 1
      %s31 = sadd.s32 %s30, 1
      %p34 = scmp.eq.s32.totalorder %s22, 1
      %p35 = scmp.ne.s32.totalorder %s30, %s32
      %p36 = scmp.eq.s32.totalorder %s22, 0
      %p37 = por %p35, %p36
      %p38 = scmp.ne.s32.totalorder %s30, %s32
      %p39 = scmp.eq.s32.totalorder %s27, 1
      %p40 = por %p38, %p39
      %p41 = scmp.ne.s32.totalorder %s32, %s33
      %p42 = scmp.eq.s32.totalorder %s27, 0
      %p43 = por %p41, %p42
      %p44 = scmp.ne.s32.totalorder %s32, %s33
      %p45 = scmp.eq.s32.totalorder %s28, 1
      %p46 = por %p44, %p45
      %p48 = scmp.ne.s32.totalorder %s33, %s47
      %p49 = scmp.eq.s32.totalorder %s28, 0
      %p50 = por %p48, %p49
      %s51 = ssub.s32 %s22, %s29
      %p52 = scmp.eq.s32.totalorder %s51, 0
      %s54 = sadd.s32 %s53, 1
      %s55 = scalar_select %p52, %s53, %s54
      %p58 = pneg %p52
      %p59 = scmp.eq.s32.totalorder %s22, 1
      %p60 = por %p58, %p59
      %p61 = scmp.ne.s32.totalorder %s53, %s56
      %p62 = scmp.eq.s32.totalorder %s22, 0
      %p63 = por %p61, %p62
      %p64 = scmp.ne.s32.totalorder %s53, %s56
      %p65 = scmp.eq.s32.totalorder %s27, 1
      %p66 = por %p64, %p65
      %p67 = scmp.ne.s32.totalorder %s56, %s57
      %p68 = scmp.eq.s32.totalorder %s27, 0
      %p69 = por %p67, %p68
      %p70 = scmp.ne.s32.totalorder %s56, %s57
      %p71 = scmp.eq.s32.totalorder %s28, 1
      %p72 = por %p70, %p71
      %p74 = scmp.ne.s32.totalorder %s57, %s73
      %p75 = scmp.eq.s32.totalorder %s28, 0
      %p76 = por %p74, %p75
      %s77 = ssub.s32 %s22, %s29
      %p78 = scmp.eq.s32.totalorder %s77, 0
      %s80 = sadd.s32 %s79, 1
      %s81 = scalar_select %p78, %s79, %s80
      %p84 = pneg %p78
      %p85 = scmp.eq.s32.totalorder %s22, 1
      %p86 = por %p84, %p85
      %p87 = scmp.ne.s32.totalorder %s79, %s82
      %p88 = scmp.eq.s32.totalorder %s22, 0
      %p89 = por %p87, %p88
      %p90 = scmp.ne.s32.totalorder %s79, %s82
      %p91 = scmp.eq.s32.totalorder %s27, 1
      %p92 = por %p90, %p91
      %p93 = scmp.ne.s32.totalorder %s82, %s83
      %p94 = scmp.eq.s32.totalorder %s27, 0
      %p95 = por %p93, %p94
      %p96 = scmp.ne.s32.totalorder %s82, %s83
      %p97 = scmp.eq.s32.totalorder %s28, 1
      %p98 = por %p96, %p97
      %p100 = scmp.ne.s32.totalorder %s83, %s99
      %p101 = scmp.eq.s32.totalorder %s28, 0
      %p102 = por %p100, %p101
      %s103 = ssub.s32 %s22, %s29
      %p104 = scmp.eq.s32.totalorder %s103, 0
      %s106 = sadd.s32 %s105, 1
      %s107 = scalar_select %p104, %s105, %s106
      %p110 = pneg %p104
      %p111 = scmp.eq.s32.totalorder %s22, 1
      %p112 = por %p110, %p111
      %p113 = scmp.ne.s32.totalorder %s105, %s108
      %p114 = scmp.eq.s32.totalorder %s22, 0
      %p115 = por %p113, %p114
      %p116 = scmp.ne.s32.totalorder %s105, %s108
      %p117 = scmp.eq.s32.totalorder %s27, 1
      %p118 = por %p116, %p117
      %p119 = scmp.ne.s32.totalorder %s108, %s109
      %p120 = scmp.eq.s32.totalorder %s27, 0
      %p121 = por %p119, %p120
      %p122 = scmp.ne.s32.totalorder %s108, %s109
      %p123 = scmp.eq.s32.totalorder %s28, 1
      %p124 = por %p122, %p123
      %p126 = scmp.ne.s32.totalorder %s109, %s125
      %p127 = scmp.eq.s32.totalorder %s28, 0
      %p128 = por %p126, %p127
      %s129 = ssub.s32 %s22, %s29
      %p130 = scmp.eq.s32.totalorder %s129, 0
      %s132 = sadd.s32 %s131, 1
      %s133 = scalar_select %p130, %s131, %s132
      %p136 = pneg %p130
      %p137 = scmp.eq.s32.totalorder %s22, 1
      %p138 = por %p136, %p137
      %p139 = scmp.ne.s32.totalorder %s131, %s134
      %p140 = scmp.eq.s32.totalorder %s22, 0
      %p141 = por %p139, %p140
      %p142 = scmp.ne.s32.totalorder %s131, %s134
      %p143 = scmp.eq.s32.totalorder %s27, 1
      %p144 = por %p142, %p143
      %p145 = scmp.ne.s32.totalorder %s134, %s135
      %p146 = scmp.eq.s32.totalorder %s27, 0
      %p147 = por %p145, %p146
      %p148 = scmp.ne.s32.totalorder %s134, %s135
      %p149 = scmp.eq.s32.totalorder %s28, 1
      %p150 = por %p148, %p149
      %p152 = scmp.ne.s32.totalorder %s135, %s151
      %p153 = scmp.eq.s32.totalorder %s28, 0
      %p154 = por %p152, %p153
      %s155 = ssub.s32 %s22, %s29
      %p156 = scmp.eq.s32.totalorder %s155, 0
      %s158 = sadd.s32 %s157, 1
      %s159 = scalar_select %p156, %s157, %s158
      %p162 = pneg %p156
      %p163 = scmp.eq.s32.totalorder %s22, 1
      %p164 = por %p162, %p163
      %p165 = scmp.ne.s32.totalorder %s157, %s160
      %p166 = scmp.eq.s32.totalorder %s22, 0
      %p167 = por %p165, %p166
      %p168 = scmp.ne.s32.totalorder %s157, %s160
      %p169 = scmp.eq.s32.totalorder %s27, 1
      %p170 = por %p168, %p169
      %p171 = scmp.ne.s32.totalorder %s160, %s161
      %p172 = scmp.eq.s32.totalorder %s27, 0
      %p173 = por %p171, %p172
      %p174 = scmp.ne.s32.totalorder %s160, %s161
      %p175 = scmp.eq.s32.totalorder %s28, 1
      %p176 = por %p174, %p175
      %p178 = scmp.ne.s32.totalorder %s161, %s177
      %p179 = scmp.eq.s32.totalorder %s28, 0
      %p180 = por %p178, %p179
      %s181 = ssub.s32 %s22, %s29
      %p182 = scmp.eq.s32.totalorder %s181, 0
      %s184 = sadd.s32 %s183, 1
      %s185 = scalar_select %p182, %s183, %s184
      %p188 = pneg %p182
      %p189 = scmp.eq.s32.totalorder %s22, 1
      %p190 = por %p188, %p189
      %p191 = scmp.ne.s32.totalorder %s183, %s186
      %p192 = scmp.eq.s32.totalorder %s22, 0
      %p193 = por %p191, %p192
      %p194 = scmp.ne.s32.totalorder %s183, %s186
      %p195 = scmp.eq.s32.totalorder %s27, 1
      %p196 = por %p194, %p195
      %p197 = scmp.ne.s32.totalorder %s186, %s187
      %p198 = scmp.eq.s32.totalorder %s27, 0
      %p199 = por %p197, %p198
      %p200 = scmp.ne.s32.totalorder %s186, %s187
      %p201 = scmp.eq.s32.totalorder %s28, 1
      %p202 = por %p200, %p201
      %p204 = scmp.ne.s32.totalorder %s187, %s203
      %p205 = scmp.eq.s32.totalorder %s28, 0
      %p206 = por %p204, %p205
      %s207 = ssub.s32 %s22, %s29
      %p208 = scmp.eq.s32.totalorder %s207, 0
      %s210 = sadd.s32 %s209, 1
      %s211 = scalar_select %p208, %s209, %s210
      %p214 = pneg %p208
      %p215 = scmp.eq.s32.totalorder %s22, 1
      %p216 = por %p214, %p215
      %p217 = scmp.ne.s32.totalorder %s209, %s212
      %p218 = scmp.eq.s32.totalorder %s22, 0
      %p219 = por %p217, %p218
      %p220 = scmp.ne.s32.totalorder %s209, %s212
      %p221 = scmp.eq.s32.totalorder %s27, 1
      %p222 = por %p220, %p221
      %p223 = scmp.ne.s32.totalorder %s212, %s213
      %p224 = scmp.eq.s32.totalorder %s27, 0
      %p225 = por %p223, %p224
      %p226 = scmp.ne.s32.totalorder %s212, %s213
      %p227 = scmp.eq.s32.totalorder %s28, 1
      %p228 = por %p226, %p227
      %p230 = scmp.ne.s32.totalorder %s213, %s229
      %p231 = scmp.eq.s32.totalorder %s28, 0
      %p232 = por %p230, %p231
      %s233 = ssub.s32 %s22, %s29
      %p234 = scmp.eq.s32.totalorder %s233, 0
      %s236 = sadd.s32 %s235, 1
      %s237 = scalar_select %p234, %s235, %s236
      %p240 = pneg %p234
      %p241 = scmp.eq.s32.totalorder %s22, 1
      %p242 = por %p240, %p241
      %p243 = scmp.ne.s32.totalorder %s235, %s238
      %p244 = scmp.eq.s32.totalorder %s22, 0
      %p245 = por %p243, %p244
      %p246 = scmp.ne.s32.totalorder %s235, %s238
      %p247 = scmp.eq.s32.totalorder %s27, 1
      %p248 = por %p246, %p247
      %p249 = scmp.ne.s32.totalorder %s238, %s239
      %p250 = scmp.eq.s32.totalorder %s27, 0
      %p251 = por %p249, %p250
      %p252 = scmp.ne.s32.totalorder %s238, %s239
      %p253 = scmp.eq.s32.totalorder %s28, 1
      %p254 = por %p252, %p253
      %p256 = scmp.ne.s32.totalorder %s239, %s255
      %p257 = scmp.eq.s32.totalorder %s28, 0
      %p258 = por %p256, %p257
      %s259 = ssub.s32 %s22, %s29
      %p260 = scmp.eq.s32.totalorder %s259, 0
      %s262 = sadd.s32 %s261, 1
      %s263 = scalar_select %p260, %s261, %s262
      %p266 = pneg %p260
      %p267 = scmp.eq.s32.totalorder %s22, 1
      %p268 = por %p266, %p267
      %p269 = scmp.ne.s32.totalorder %s261, %s264
      %p270 = scmp.eq.s32.totalorder %s22, 0
      %p271 = por %p269, %p270
      %p272 = scmp.ne.s32.totalorder %s261, %s264
      %p273 = scmp.eq.s32.totalorder %s27, 1
      %p274 = por %p272, %p273
      %p275 = scmp.ne.s32.totalorder %s264, %s265
      %p276 = scmp.eq.s32.totalorder %s27, 0
      %p277 = por %p275, %p276
      %p278 = scmp.ne.s32.totalorder %s264, %s265
      %p279 = scmp.eq.s32.totalorder %s28, 1
      %p280 = por %p278, %p279
      %p282 = scmp.ne.s32.totalorder %s265, %s281
      %p283 = scmp.eq.s32.totalorder %s28, 0
      %p284 = por %p282, %p283
      %s285 = ssub.s32 %s22, %s29
      %p286 = scmp.eq.s32.totalorder %s285, 0
      %s288 = sadd.s32 %s287, 1
      %s289 = scalar_select %p286, %s287, %s288
      %p292 = pneg %p286
      %p293 = scmp.eq.s32.totalorder %s22, 1
      %p294 = por %p292, %p293
      %p295 = scmp.ne.s32.totalorder %s287, %s290
      %p296 = scmp.eq.s32.totalorder %s22, 0
      %p297 = por %p295, %p296
      %p298 = scmp.ne.s32.totalorder %s287, %s290
      %p299 = scmp.eq.s32.totalorder %s27, 1
      %p300 = por %p298, %p299
      %p301 = scmp.ne.s32.totalorder %s290, %s291
      %p302 = scmp.eq.s32.totalorder %s27, 0
      %p303 = por %p301, %p302
      %p304 = scmp.ne.s32.totalorder %s290, %s291
      %p305 = scmp.eq.s32.totalorder %s28, 1
      %p306 = por %p304, %p305
      %p308 = scmp.ne.s32.totalorder %s291, %s307
      %p309 = scmp.eq.s32.totalorder %s28, 0
      %p310 = por %p308, %p309
      %s311 = ssub.s32 %s22, %s29
      %p312 = scmp.eq.s32.totalorder %s311, 0
      %s314 = sadd.s32 %s313, 1
      %s315 = scalar_select %p312, %s313, %s314
      %p318 = pneg %p312
      %p319 = scmp.eq.s32.totalorder %s22, 1
      %p320 = por %p318, %p319
      %p321 = scmp.ne.s32.totalorder %s313, %s316
      %p322 = scmp.eq.s32.totalorder %s22, 0
      %p323 = por %p321, %p322
      %p324 = scmp.ne.s32.totalorder %s313, %s316
      %p325 = scmp.eq.s32.totalorder %s27, 1
      %p326 = por %p324, %p325
      %p327 = scmp.ne.s32.totalorder %s316, %s317
      %p328 = scmp.eq.s32.totalorder %s27, 0
      %p329 = por %p327, %p328
      %p330 = scmp.ne.s32.totalorder %s316, %s317
      %p331 = scmp.eq.s32.totalorder %s28, 1
      %p332 = por %p330, %p331
      %p334 = scmp.ne.s32.totalorder %s317, %s333
      %p335 = scmp.eq.s32.totalorder %s28, 0
      %p336 = por %p334, %p335
      %s337 = ssub.s32 %s22, %s29
      %p338 = scmp.eq.s32.totalorder %s337, 0
      %s340 = sadd.s32 %s339, 1
      %s341 = scalar_select %p338, %s339, %s340
      %p344 = pneg %p338
      %p345 = scmp.eq.s32.totalorder %s22, 1
      %p346 = por %p344, %p345
      %p347 = scmp.ne.s32.totalorder %s339, %s342
      %p348 = scmp.eq.s32.totalorder %s22, 0
      %p349 = por %p347, %p348
      %p350 = scmp.ne.s32.totalorder %s339, %s342
      %p351 = scmp.eq.s32.totalorder %s27, 1
      %p352 = por %p350, %p351
      %p353 = scmp.ne.s32.totalorder %s342, %s343
      %p354 = scmp.eq.s32.totalorder %s27, 0
      %p355 = por %p353, %p354
      %p356 = scmp.ne.s32.totalorder %s342, %s343
      %p357 = scmp.eq.s32.totalorder %s28, 1
      %p358 = por %p356, %p357
      %p360 = scmp.ne.s32.totalorder %s343, %s359
      %p361 = scmp.eq.s32.totalorder %s28, 0
      %p362 = por %p360, %p361
      %s364 = sadd.s32 %s363, 1
      %p367 = scmp.eq.s32.totalorder %s22, 1
      %p368 = scmp.ne.s32.totalorder %s363, %s365
      %p369 = scmp.eq.s32.totalorder %s22, 0
      %p370 = por %p368, %p369
      %p371 = scmp.ne.s32.totalorder %s363, %s365
      %p372 = scmp.eq.s32.totalorder %s27, 1
      %p373 = por %p371, %p372
      %p374 = scmp.ne.s32.totalorder %s365, %s366
      %p375 = scmp.eq.s32.totalorder %s27, 0
      %p376 = por %p374, %p375
      %p377 = scmp.ne.s32.totalorder %s365, %s366
      %p378 = scmp.eq.s32.totalorder %s28, 1
      %p379 = por %p377, %p378
      %p381 = scmp.ne.s32.totalorder %s366, %s380
      %p382 = scmp.eq.s32.totalorder %s28, 0
      %p383 = por %p381, %p382
      %s385 = sadd.s32 %s384, 1
      %p388 = scmp.eq.s32.totalorder %s22, 1
      %p389 = scmp.ne.s32.totalorder %s384, %s386
      %p390 = scmp.eq.s32.totalorder %s22, 0
      %p391 = por %p389, %p390
      %p392 = scmp.ne.s32.totalorder %s384, %s386
      %p393 = scmp.eq.s32.totalorder %s27, 1
      %p394 = por %p392, %p393
      %p395 = scmp.ne.s32.totalorder %s386, %s387
      %p396 = scmp.eq.s32.totalorder %s27, 0
      %p397 = por %p395, %p396
      %p398 = scmp.ne.s32.totalorder %s386, %s387
      %p399 = scmp.eq.s32.totalorder %s28, 1
      %p400 = por %p398, %p399
      %p402 = scmp.ne.s32.totalorder %s387, %s401
      %p403 = scmp.eq.s32.totalorder %s28, 0
      %p404 = por %p402, %p403
      %s406 = sadd.s32 %s405, 1
      %p409 = scmp.eq.s32.totalorder %s22, 1
      %p410 = scmp.ne.s32.totalorder %s405, %s407
      %p411 = scmp.eq.s32.totalorder %s22, 0
      %p412 = por %p410, %p411
      %p413 = scmp.ne.s32.totalorder %s405, %s407
      %p414 = scmp.eq.s32.totalorder %s27, 1
      %p415 = por %p413, %p414
      %p416 = scmp.ne.s32.totalorder %s407, %s408
      %p417 = scmp.eq.s32.totalorder %s27, 0
      %p418 = por %p416, %p417
      %p419 = scmp.ne.s32.totalorder %s407, %s408
      %p420 = scmp.eq.s32.totalorder %s28, 1
      %p421 = por %p419, %p420
      %p423 = scmp.ne.s32.totalorder %s408, %s422
      %p424 = scmp.eq.s32.totalorder %s28, 0
      %p425 = por %p423, %p424
      %p426 = scmp.le.s32.totalorder 1, %s22
      %p427 = scmp.lt.s32.totalorder %s22, 3
      %p428 = pnand %p426, %p427
      %p429 = pneg %p428
      // Predicated region
      $region9: #{vit_forward.3} parent=5 // pred_check
        _
      $region10: #{vit_forward.3} parent=5 // pred_check_branch
        %431 = sbr.rel (%p428) target = $region12
      $region11: #{vit_forward.3} parent=5 // pred_region
        %s432 = ssub.s32 %s22, 1
        // Predicated region
        $region13: #{vit_forward.3} parent=11 // pred_check
          %p433 = pneg %p43
        $region14: #{vit_forward.3} parent=11 // pred_check_branch
          %435 = sbr.rel (%p433) target = $region16
        $region15: #{vit_forward.3} parent=11 // pred_region
          _
        $region16: #{vit_forward.3} parent=11 // pred_fallthru
          _
        // Predicated region
        $region17: #{vit_forward.3} parent=11 // pred_check
          %p436 = pneg %p376
        $region18: #{vit_forward.3} parent=11 // pred_check_branch
          %438 = sbr.rel (%p436) target = $region20
        $region19: #{vit_forward.3} parent=11 // pred_region
          _
        $region20: #{vit_forward.3} parent=11 // pred_fallthru
          _
        // Predicated region
        $region21: #{vit_forward.3} parent=11 // pred_check
          %p439 = pneg %p397
        $region22: #{vit_forward.3} parent=11 // pred_check_branch
          %441 = sbr.rel (%p439) target = $region24
        $region23: #{vit_forward.3} parent=11 // pred_region
          _
        $region24: #{vit_forward.3} parent=11 // pred_fallthru
          _
      $region12: #{vit_forward.3} parent=5 // pred_fallthru
        _
      %p442 = scmp.lt.s32.totalorder %s22, 2
      // Predicated region
      $region25: #{vit_forward.3} parent=5 // pred_check
        %p443 = pneg %p442
      $region26: #{vit_forward.3} parent=5 // pred_check_branch
        %445 = sbr.rel (%p443) target = $region28
      $region27: #{vit_forward.3} parent=5 // pred_region
        // Predicated region
        $region29: #{vit_forward.3} parent=27 // pred_check
          %p446 = pneg %p63
        $region30: #{vit_forward.3} parent=27 // pred_check_branch
          %448 = sbr.rel (%p446) target = $region32
        $region31: #{vit_forward.3} parent=27 // pred_region
          %p449 = scmp.lt.s32.totalorder %s22, 1
          %s450 = scalar_select %p449, %s22, 1
          %s451 = scalar_lea.vmem %s1, %s450
        $region32: #{vit_forward.3} parent=27 // pred_fallthru
          _
        // Predicated region
        $region33: #{vit_forward.3} parent=27 // pred_check
          %p452 = pneg %p89
        $region34: #{vit_forward.3} parent=27 // pred_check_branch
          %454 = sbr.rel (%p452) target = $region36
        $region35: #{vit_forward.3} parent=27 // pred_region
          %p455 = scmp.lt.s32.totalorder %s22, 1
          %s456 = scalar_select %p455, %s22, 1
          %s457 = scalar_lea.vmem %s2, %s456
        $region36: #{vit_forward.3} parent=27 // pred_fallthru
          _
        // Predicated region
        $region37: #{vit_forward.3} parent=27 // pred_check
          %p458 = pneg %p115
        $region38: #{vit_forward.3} parent=27 // pred_check_branch
          %460 = sbr.rel (%p458) target = $region40
        $region39: #{vit_forward.3} parent=27 // pred_region
          %p461 = scmp.lt.s32.totalorder %s22, 1
          %s462 = scalar_select %p461, %s22, 1
          %s463 = smul.addr %s462, 4
          %s464 = smul.addr %s463, 4
          %s465 = scalar_lea.vmem %s3, %s464
        $region40: #{vit_forward.3} parent=27 // pred_fallthru
          _
        // Predicated region
        $region41: #{vit_forward.3} parent=27 // pred_check
          %p466 = pneg %p141
        $region42: #{vit_forward.3} parent=27 // pred_check_branch
          %468 = sbr.rel (%p466) target = $region44
        $region43: #{vit_forward.3} parent=27 // pred_region
          %p469 = scmp.lt.s32.totalorder %s22, 1
          %s470 = scalar_select %p469, %s22, 1
          %s471 = scalar_lea.vmem %s4, %s470
        $region44: #{vit_forward.3} parent=27 // pred_fallthru
          _
        // Predicated region
        $region45: #{vit_forward.3} parent=27 // pred_check
          %p472 = pneg %p167
        $region46: #{vit_forward.3} parent=27 // pred_check_branch
          %474 = sbr.rel (%p472) target = $region48
        $region47: #{vit_forward.3} parent=27 // pred_region
          %p475 = scmp.lt.s32.totalorder %s22, 1
          %s476 = scalar_select %p475, %s22, 1
          %s477 = smul.addr %s476, 4
          %s478 = smul.addr %s477, 4
          %s479 = scalar_lea.vmem %s5, %s478
        $region48: #{vit_forward.3} parent=27 // pred_fallthru
          _
        // Predicated region
        $region49: #{vit_forward.3} parent=27 // pred_check
          %p480 = pneg %p193
        $region50: #{vit_forward.3} parent=27 // pred_check_branch
          %482 = sbr.rel (%p480) target = $region52
        $region51: #{vit_forward.3} parent=27 // pred_region
          %p483 = scmp.lt.s32.totalorder %s22, 1
          %s484 = scalar_select %p483, %s22, 1
          %s485 = scalar_lea.vmem %s6, %s484
        $region52: #{vit_forward.3} parent=27 // pred_fallthru
          _
        // Predicated region
        $region53: #{vit_forward.3} parent=27 // pred_check
          %p486 = pneg %p219
        $region54: #{vit_forward.3} parent=27 // pred_check_branch
          %488 = sbr.rel (%p486) target = $region56
        $region55: #{vit_forward.3} parent=27 // pred_region
          %p489 = scmp.lt.s32.totalorder %s22, 1
          %s490 = scalar_select %p489, %s22, 1
          %s491 = scalar_lea.vmem %s7, %s490
        $region56: #{vit_forward.3} parent=27 // pred_fallthru
          _
        // Predicated region
        $region57: #{vit_forward.3} parent=27 // pred_check
          %p492 = pneg %p245
        $region58: #{vit_forward.3} parent=27 // pred_check_branch
          %494 = sbr.rel (%p492) target = $region60
        $region59: #{vit_forward.3} parent=27 // pred_region
          %p495 = scmp.lt.s32.totalorder %s22, 1
          %s496 = scalar_select %p495, %s22, 1
          %s497 = scalar_lea.vmem %s8, %s496
        $region60: #{vit_forward.3} parent=27 // pred_fallthru
          _
        // Predicated region
        $region61: #{vit_forward.3} parent=27 // pred_check
          %p498 = pneg %p271
        $region62: #{vit_forward.3} parent=27 // pred_check_branch
          %500 = sbr.rel (%p498) target = $region64
        $region63: #{vit_forward.3} parent=27 // pred_region
          %p501 = scmp.lt.s32.totalorder %s22, 1
          %s502 = scalar_select %p501, %s22, 1
          %s503 = smul.addr %s502, 4
          %s504 = smul.addr %s503, 4
          %s505 = scalar_lea.vmem %s9, %s504
        $region64: #{vit_forward.3} parent=27 // pred_fallthru
          _
        // Predicated region
        $region65: #{vit_forward.3} parent=27 // pred_check
          %p506 = pneg %p297
        $region66: #{vit_forward.3} parent=27 // pred_check_branch
          %508 = sbr.rel (%p506) target = $region68
        $region67: #{vit_forward.3} parent=27 // pred_region
          %p509 = scmp.lt.s32.totalorder %s22, 1
          %s510 = scalar_select %p509, %s22, 1
          %s511 = scalar_lea.vmem %s10, %s510
        $region68: #{vit_forward.3} parent=27 // pred_fallthru
          _
        // Predicated region
        $region69: #{vit_forward.3} parent=27 // pred_check
          %p512 = pneg %p323
        $region70: #{vit_forward.3} parent=27 // pred_check_branch
          %514 = sbr.rel (%p512) target = $region72
        $region71: #{vit_forward.3} parent=27 // pred_region
          %p515 = scmp.lt.s32.totalorder %s22, 1
          %s516 = scalar_select %p515, %s22, 1
          %s517 = smul.addr %s516, 8
          %s518 = smul.addr %s517, 4
          %s519 = scalar_lea.vmem %s11, %s518
        $region72: #{vit_forward.3} parent=27 // pred_fallthru
          _
        // Predicated region
        $region73: #{vit_forward.3} parent=27 // pred_check
          %p520 = pneg %p349
        $region74: #{vit_forward.3} parent=27 // pred_check_branch
          %522 = sbr.rel (%p520) target = $region76
        $region75: #{vit_forward.3} parent=27 // pred_region
          %p523 = scmp.lt.s32.totalorder %s22, 1
          %s524 = scalar_select %p523, %s22, 1
          %s525 = scalar_lea.vmem %s12, %s524
        $region76: #{vit_forward.3} parent=27 // pred_fallthru
          _
      $region28: #{vit_forward.3} parent=5 // pred_fallthru
        _
      %p526 = scmp.le.s32.totalorder 1, %s22
      %p527 = scmp.lt.s32.totalorder %s22, 3
      %p528 = pnand %p526, %p527
      %p529 = pneg %p528
      // Predicated region
      $region77: #{vit_forward.3} parent=5 // pred_check
        _
      $region78: #{vit_forward.3} parent=5 // pred_check_branch
        %531 = sbr.rel (%p528) target = $region80
      $region79: #{vit_forward.3} parent=5 // pred_region
        %s532 = ssub.s32 %s22, 1
        %p533 = pneg %p43
        %p534 = pneg %p40
        %p535 = scmp.lt.s32.totalorder %s27, 1
        %s536 = scalar_select %p535, %s27, 1
        %s537 = scalar_lea.vmem %s1, %s536
        %p538 = pneg %p69
        %p539 = pneg %p66
        %p540 = scmp.lt.s32.totalorder %s27, 1
        %s541 = scalar_select %p540, %s27, 1
        %s542 = scalar_lea.vmem %s2, %s541
        %p543 = pneg %p95
        %p544 = pneg %p92
        %p545 = scmp.lt.s32.totalorder %s27, 1
        %s546 = scalar_select %p545, %s27, 1
        %s547 = smul.addr %s546, 4
        %s548 = smul.addr %s547, 4
        %s549 = scalar_lea.vmem %s3, %s548
        %p550 = pneg %p121
        %p551 = pneg %p118
        %p552 = scmp.lt.s32.totalorder %s27, 1
        %s553 = scalar_select %p552, %s27, 1
        %s554 = scalar_lea.vmem %s4, %s553
        %p555 = pneg %p147
        %p556 = pneg %p144
        %p557 = scmp.lt.s32.totalorder %s27, 1
        %s558 = scalar_select %p557, %s27, 1
        %s559 = smul.addr %s558, 4
        %s560 = smul.addr %s559, 4
        %s561 = scalar_lea.vmem %s5, %s560
        %p562 = pneg %p173
        %p563 = pneg %p170
        %p564 = scmp.lt.s32.totalorder %s27, 1
        %s565 = scalar_select %p564, %s27, 1
        %s566 = scalar_lea.vmem %s6, %s565
        %p567 = pneg %p199
        %p568 = pneg %p196
        %p569 = scmp.lt.s32.totalorder %s27, 1
        %s570 = scalar_select %p569, %s27, 1
        %s571 = scalar_lea.vmem %s7, %s570
        %p572 = pneg %p225
        %p573 = pneg %p222
        %p574 = scmp.lt.s32.totalorder %s27, 1
        %s575 = scalar_select %p574, %s27, 1
        %s576 = scalar_lea.vmem %s8, %s575
        %p577 = pneg %p251
        %p578 = pneg %p248
        %p579 = scmp.lt.s32.totalorder %s27, 1
        %s580 = scalar_select %p579, %s27, 1
        %s581 = smul.addr %s580, 4
        %s582 = smul.addr %s581, 4
        %s583 = scalar_lea.vmem %s9, %s582
        %p584 = pneg %p277
        %p585 = pneg %p274
        %p586 = scmp.lt.s32.totalorder %s27, 1
        %s587 = scalar_select %p586, %s27, 1
        %s588 = scalar_lea.vmem %s10, %s587
        %p589 = pneg %p303
        %p590 = pneg %p300
        %p591 = scmp.lt.s32.totalorder %s27, 1
        %s592 = scalar_select %p591, %s27, 1
        %s593 = smul.addr %s592, 8
        %s594 = smul.addr %s593, 4
        %s595 = scalar_lea.vmem %s11, %s594
        %p596 = pneg %p329
        %p597 = pneg %p326
        %p598 = scmp.lt.s32.totalorder %s27, 1
        %s599 = scalar_select %p598, %s27, 1
        %s600 = scalar_lea.vmem %s12, %s599
        %p601 = pneg %p355
        %p602 = pneg %p352
        %p603 = pneg %p376
        %p604 = pneg %p373
        %p605 = pneg %p397
        %p606 = pneg %p394
        %p607 = pneg %p418
        %p608 = pneg %p415
        %p609 = scmp.lt.s32.totalorder %s27, 1
        %s610 = scalar_select %p609, %s27, 1
        %s611 = scalar_lea.vmem %s1, %s610
        %p612 = scmp.lt.s32.totalorder %s27, 1
        %s613 = scalar_select %p612, %s27, 1
        %s614 = scalar_lea.vmem %s2, %s613
        %p615 = scmp.lt.s32.totalorder %s27, 1
        %s616 = scalar_select %p615, %s27, 1
        %s617 = smul.addr %s616, 4
        %s618 = smul.addr %s617, 4
        %s619 = scalar_lea.vmem %s3, %s618
        %p620 = scmp.lt.s32.totalorder %s27, 1
        %s621 = scalar_select %p620, %s27, 1
        %s622 = scalar_lea.vmem %s4, %s621
        %p623 = scmp.lt.s32.totalorder %s27, 1
        %s624 = scalar_select %p623, %s27, 1
        %s625 = smul.addr %s624, 4
        %s626 = smul.addr %s625, 4
        %s627 = scalar_lea.vmem %s5, %s626
        %p628 = scmp.lt.s32.totalorder %s27, 1
        %s629 = scalar_select %p628, %s27, 1
        %s630 = scalar_lea.vmem %s6, %s629
        %p631 = scmp.lt.s32.totalorder %s27, 1
        %s632 = scalar_select %p631, %s27, 1
        %s633 = scalar_lea.vmem %s7, %s632
        %p634 = scmp.lt.s32.totalorder %s27, 1
        %s635 = scalar_select %p634, %s27, 1
        %s636 = scalar_lea.vmem %s8, %s635
        %p637 = scmp.lt.s32.totalorder %s27, 1
        %s638 = scalar_select %p637, %s27, 1
        %s639 = smul.addr %s638, 4
        %s640 = smul.addr %s639, 4
        %s641 = scalar_lea.vmem %s9, %s640
        %p642 = scmp.lt.s32.totalorder %s27, 1
        %s643 = scalar_select %p642, %s27, 1
        %s644 = scalar_lea.vmem %s10, %s643
        %p645 = scmp.lt.s32.totalorder %s27, 1
        %s646 = scalar_select %p645, %s27, 1
        %s647 = smul.addr %s646, 8
        %s648 = smul.addr %s647, 4
        %s649 = scalar_lea.vmem %s11, %s648
        %p650 = scmp.lt.s32.totalorder %s27, 1
        %s651 = scalar_select %p650, %s27, 1
        %s652 = scalar_lea.vmem %s12, %s651
        %p654 = scmp.eq.s32.totalorder %s27, 0
        // Predicated region
        $region81: #{vit_forward.3} parent=79 // pred_check
          %p655 = pneg %p654
        $region82: #{vit_forward.3} parent=79 // pred_check_branch
          %657 = sbr.rel (%p655) target = $region84
        $region83: #{vit_forward.3} parent=79 // pred_region
          %v658 = vld [vmem:[%s0] sm:$0xff]
          %v659 = vld [vmem:[%s0 + $0x8] sm:$0xff]
          %v660 = vld [vmem:[%s0 + $0x10] sm:$0xff]
          %v661 = vld [vmem:[%s0 + $0x18] sm:$0xff]
          %vm662 = vcmask 261120
          %663 = vst.msk [vmem:[#allocation2] sm:$0xff] %vm662, %v658
          %664 = vst.msk [vmem:[#allocation2 + $0x8] sm:$0xff] %vm662, %v659
          %665 = vst.msk [vmem:[#allocation2 + $0x10] sm:$0xff] %vm662, %v660
          %666 = vst.msk [vmem:[#allocation2 + $0x18] sm:$0xff] %vm662, %v661
        $region84: #{vit_forward.3} parent=79 // pred_fallthru
          _
        %v667 = vld [vmem:[#allocation2] sm:$0xff]
        %v668 = vld [vmem:[#allocation2 + $0x8] sm:$0xff]
        %v669 = vld [vmem:[#allocation2 + $0x10] sm:$0xff]
        %v670 = vld [vmem:[#allocation2 + $0x18] sm:$0xff]
        %v671 = vld [vmem:[%s611] sm:$0x1]
        %v672 = vld [vmem:[%s614] sm:$0x1]
        %vm673 = vcmask 261120
        %v674 = vsel %vm673, %v667, 0.0
        %675 = vadd.xlane.f32.xlu0 %v674
        %v676 = vpop.xlane.xlu0 %675
        %v677 = vsel %vm673, %v668, 0.0
        %678 = vadd.xlane.f32.xlu0 %v677
        %v679 = vpop.xlane.xlu0 %678
        %v680 = vsel %vm673, %v669, 0.0
        %681 = vadd.xlane.f32.xlu0 %v680
        %v682 = vpop.xlane.xlu0 %681
        %v683 = vsel %vm673, %v670, 0.0
        %684 = vadd.xlane.f32.xlu0 %v683
        %v685 = vpop.xlane.xlu0 %684
        %v686 = vrcp.pop 32.0
        %v687 = vmul.f32 %v676, %v686
        %v688 = vmul.f32 %v679, %v686
        %v689 = vmul.f32 %v682, %v686
        %v690 = vmul.f32 %v685, %v686
        %v691 = vsub.f32 %v667, %v687
        %v692 = vsub.f32 %v668, %v688
        %v693 = vsub.f32 %v669, %v689
        %v694 = vsub.f32 %v670, %v690
        %v695 = vmul.f32 %v691, %v691
        %v696 = vmul.f32 %v692, %v692
        %v697 = vmul.f32 %v693, %v693
        %v698 = vmul.f32 %v694, %v694
        %v699 = vsel %vm673, %v695, 0.0
        %700 = vadd.xlane.f32.xlu0 %v699
        %v701 = vpop.xlane.xlu0 %700
        %v702 = vsel %vm673, %v696, 0.0
        %703 = vadd.xlane.f32.xlu0 %v702
        %v704 = vpop.xlane.xlu0 %703
        %v705 = vsel %vm673, %v697, 0.0
        %706 = vadd.xlane.f32.xlu0 %v705
        %v707 = vpop.xlane.xlu0 %706
        %v708 = vsel %vm673, %v698, 0.0
        %709 = vadd.xlane.f32.xlu0 %v708
        %v710 = vpop.xlane.xlu0 %709
        %v711 = vmul.f32 %v701, %v686
        %v712 = vmul.f32 %v704, %v686
        %v713 = vmul.f32 %v707, %v686
        %v714 = vmul.f32 %v710, %v686
        %v715 = vadd.f32 %v711, 1e-05
        %v716 = vadd.f32 %v712, 1e-05
        %v717 = vadd.f32 %v713, 1e-05
        %v718 = vadd.f32 %v714, 1e-05
        %v719 = vrsqrt.pop %v715
        %v720 = vrsqrt.pop %v716
        %v721 = vrsqrt.pop %v717
        %v722 = vrsqrt.pop %v718
        %v723 = vmul.f32 %v691, %v719
        %v724 = vmul.f32 %v692, %v720
        %v725 = vmul.f32 %v693, %v721
        %v726 = vmul.f32 %v694, %v722
        %v728 = vlaneseq
        %v729 = vshrl.u32 %v728, 7
        %v730 = vsub.s32 0, %v729
        %v731 = vrot.slane %v671, %v730
        %v733 = vmul.f32 %v723, %v731
        %v734 = vmul.f32 %v724, %v731
        %v735 = vmul.f32 %v725, %v731
        %v736 = vmul.f32 %v726, %v731
        %v738 = vlaneseq
        %v739 = vshrl.u32 %v738, 7
        %v740 = vsub.s32 0, %v739
        %v741 = vrot.slane %v672, %v740
        %v743 = vadd.f32 %v733, %v741
        %v744 = vadd.f32 %v734, %v741
        %v745 = vadd.f32 %v735, %v741
        %v746 = vadd.f32 %v736, %v741
        %v747 = vpack.c.bf16 %v744, %v743
        %v748 = vpack.c.bf16 %v746, %v745
        %v749 = vld [vmem:[%s619] sm:$0xf]
        %v750 = vld [vmem:[%s619 + $0x4] sm:$0xf]
        %v751 = vld [vmem:[%s619 + $0x8] sm:$0xf]
        %v752 = vld [vmem:[%s619 + $0xc] sm:$0xf]
        %v753 = vld [vmem:[%s622] sm:$0x1]
        %v755 = vlaneseq
        %v756 = vshrl.u32 %v755, 7
        %v757 = vsub.s32 0, %v756
        %v758 = vrot.slane %v753, %v757
        %v764 = vunpack.c.l.b16 %v749
        %v765 = vunpack.c.l.b16 %v750
        %v766 = vunpack.c.l.b16 %v751
        %v767 = vunpack.c.l.b16 %v752
        %v768 = vpack.c.b16 %v765, %v764
        %v769 = vpack.c.b16 %v767, %v766
        %v773 = vsel %vm673, %v747, 0
        %v776 = vsel %vm673, %v748, 0
        %778 = vmatprep.subr.bf16.mxu0 0
        %779 = vmatpush1.bf16.msra.mxu0 %v768
        %780 = vmatprep.subr.bf16.mxu0 0
        %781 = vmatpush1.bf16.msra.mxu0 %v769
        %782 = vmatprep.subr.bf16.mxu0 0
        %783 = vmatpush1.bf16.msra.mxu0 0
        %784 = vmatprep.subr.bf16.mxu0 0
        %785 = vmatpush1.bf16.msra.mxu0 0
        %786 = vmatprep.subr.bf16.mxu0 0
        %787 = vmatpush1.bf16.msra.mxu0 0
        %788 = vmatprep.subr.bf16.mxu0 0
        %789 = vmatpush1.bf16.msra.mxu0 0
        %790 = vmatprep.subr.bf16.mxu0 0
        %791 = vmatpush1.bf16.msra.mxu0 0
        %792 = vmatprep.subr.bf16.mxu0 0
        %793 = vmatpush1.bf16.msra.mxu0 0
        %794 = vmatprep.subr.bf16.mxu0 0
        %795 = vmatpush1.bf16.msra.mxu0 0
        %796 = vmatprep.subr.bf16.mxu0 0
        %797 = vmatpush1.bf16.msra.mxu0 0
        %798 = vmatprep.subr.bf16.mxu0 0
        %799 = vmatpush1.bf16.msra.mxu0 0
        %800 = vmatprep.subr.bf16.mxu0 0
        %801 = vmatpush1.bf16.msra.mxu0 0
        %802 = vmatprep.subr.bf16.mxu0 0
        %803 = vmatpush1.bf16.msra.mxu0 0
        %804 = vmatprep.subr.bf16.mxu0 0
        %805 = vmatpush1.bf16.msra.mxu0 0
        %806 = vmatprep.subr.bf16.mxu0 0
        %807 = vmatpush1.bf16.msra.mxu0 0
        %808 = vmatprep.subr.bf16.mxu0 0
        %809 = vmatpush1.bf16.msra.mxu0 0
        %810 = vmatprep.mubr.bf16.mxu0 0
        %811 = vmatmul.mubr.bf16.gmra.mrb[0].mxu0 %v773
        %v812 = vpop.f32.mrb[0].mxu0
        %v813 = vadd.f32 %v758, %v812
        %v814 = vpop.f32.mrb[0].mxu0
        %v815 = vpop.f32.mrb[0].mxu0
        %v816 = vadd.f32 %v758, %v815
        %v817 = vpop.f32.mrb[0].mxu0
        %818 = vmatprep.mubr.bf16.mxu0 0
        %819 = vmatmul.mubr.bf16.gmra.mrb[0].mxu0 %v776
        %v820 = vpop.f32.mrb[0].mxu0
        %v821 = vadd.f32 %v758, %v820
        %v822 = vpop.f32.mrb[0].mxu0
        %v823 = vpop.f32.mrb[0].mxu0
        %v824 = vadd.f32 %v758, %v823
        %v825 = vpop.f32.mrb[0].mxu0
        %826 = vdwg.mxu0
        %v827 = vpack.c.bf16 %v816, %v813
        %v828 = vpack.c.bf16 %v824, %v821
        %830 = vrot.lane.b32.xlu0 %v827, 96
        %v831 = vpop.permute.xlu0 %830
        %vm832 = vcmask 64512
        %v834 = vsel %vm832, %v827, 0
        %v837 = vsel %vm832, %v831, 0
        %839 = vmatprep.subr.bf16.mxu0 0
        %840 = vmatpush1.bf16.xpose.msra.mxu0 %v837
        %841 = vmatprep.subr.bf16.mxu0 0
        %842 = vmatpush1.bf16.xpose.msra.mxu0 0
        %843 = vmatprep.subr.bf16.mxu0 0
        %844 = vmatpush1.bf16.xpose.msra.mxu0 0
        %845 = vmatprep.subr.bf16.mxu0 0
        %846 = vmatpush1.bf16.xpose.msra.mxu0 0
        %847 = vmatprep.subr.bf16.mxu0 0
        %848 = vmatpush1.bf16.xpose.msra.mxu0 0
        %849 = vmatprep.subr.bf16.mxu0 0
        %850 = vmatpush1.bf16.xpose.msra.mxu0 0
        %851 = vmatprep.subr.bf16.mxu0 0
        %852 = vmatpush1.bf16.xpose.msra.mxu0 0
        %853 = vmatprep.subr.bf16.mxu0 0
        %854 = vmatpush1.bf16.xpose.msra.mxu0 0
        %855 = vmatprep.subr.bf16.mxu0 0
        %856 = vmatpush1.bf16.xpose.msra.mxu0 0
        %857 = vmatprep.subr.bf16.mxu0 0
        %858 = vmatpush1.bf16.xpose.msra.mxu0 0
        %859 = vmatprep.subr.bf16.mxu0 0
        %860 = vmatpush1.bf16.xpose.msra.mxu0 0
        %861 = vmatprep.subr.bf16.mxu0 0
        %862 = vmatpush1.bf16.xpose.msra.mxu0 0
        %863 = vmatprep.subr.bf16.mxu0 0
        %864 = vmatpush1.bf16.xpose.msra.mxu0 0
        %865 = vmatprep.subr.bf16.mxu0 0
        %866 = vmatpush1.bf16.xpose.msra.mxu0 0
        %867 = vmatprep.subr.bf16.mxu0 0
        %868 = vmatpush1.bf16.xpose.msra.mxu0 0
        %869 = vmatprep.subr.bf16.mxu0 0
        %870 = vmatpush1.bf16.xpose.msra.mxu0 0
        %871 = vmatprep.mubr.bf16.mxu0 0
        %872 = vmatmul.mubr.bf16.gmra.mrb[0].mxu0 %v834
        %v873 = vpop.f32.mrb[0].mxu0
        %v874 = vadd.f32 0.0, %v873
        %v875 = vpop.f32.mrb[0].mxu0
        %v876 = vpop.f32.mrb[0].mxu0
        %v877 = vadd.f32 0.0, %v876
        %v878 = vpop.f32.mrb[0].mxu0
        %879 = vdwg.mxu0
        %881 = vrot.lane.b32.xlu0 %v828, 96
        %v882 = vpop.permute.xlu0 %881
        %v884 = vsel %vm832, %v828, 0
        %v887 = vsel %vm832, %v882, 0
        %889 = vmatprep.subr.bf16.mxu0 0
        %890 = vmatpush1.bf16.xpose.msra.mxu0 %v887
        %891 = vmatprep.subr.bf16.mxu0 0
        %892 = vmatpush1.bf16.xpose.msra.mxu0 0
        %893 = vmatprep.subr.bf16.mxu0 0
        %894 = vmatpush1.bf16.xpose.msra.mxu0 0
        %895 = vmatprep.subr.bf16.mxu0 0
        %896 = vmatpush1.bf16.xpose.msra.mxu0 0
        %897 = vmatprep.subr.bf16.mxu0 0
        %898 = vmatpush1.bf16.xpose.msra.mxu0 0
        %899 = vmatprep.subr.bf16.mxu0 0
        %900 = vmatpush1.bf16.xpose.msra.mxu0 0
        %901 = vmatprep.subr.bf16.mxu0 0
        %902 = vmatpush1.bf16.xpose.msra.mxu0 0
        %903 = vmatprep.subr.bf16.mxu0 0
        %904 = vmatpush1.bf16.xpose.msra.mxu0 0
        %905 = vmatprep.subr.bf16.mxu0 0
        %906 = vmatpush1.bf16.xpose.msra.mxu0 0
        %907 = vmatprep.subr.bf16.mxu0 0
        %908 = vmatpush1.bf16.xpose.msra.mxu0 0
        %909 = vmatprep.subr.bf16.mxu0 0
        %910 = vmatpush1.bf16.xpose.msra.mxu0 0
        %911 = vmatprep.subr.bf16.mxu0 0
        %912 = vmatpush1.bf16.xpose.msra.mxu0 0
        %913 = vmatprep.subr.bf16.mxu0 0
        %914 = vmatpush1.bf16.xpose.msra.mxu0 0
        %915 = vmatprep.subr.bf16.mxu0 0
        %916 = vmatpush1.bf16.xpose.msra.mxu0 0
        %917 = vmatprep.subr.bf16.mxu0 0
        %918 = vmatpush1.bf16.xpose.msra.mxu0 0
        %919 = vmatprep.subr.bf16.mxu0 0
        %920 = vmatpush1.bf16.xpose.msra.mxu0 0
        %921 = vmatprep.mubr.bf16.mxu0 0
        %922 = vmatmul.mubr.bf16.gmra.mrb[0].mxu0 %v884
        %v923 = vpop.f32.mrb[0].mxu0
        %v924 = vadd.f32 0.0, %v923
        %v925 = vpop.f32.mrb[0].mxu0
        %v926 = vpop.f32.mrb[0].mxu0
        %v927 = vadd.f32 0.0, %v926
        %v928 = vpop.f32.mrb[0].mxu0
        %929 = vdwg.mxu0
        %vm930 = vcmask 130048
        %v931 = vsel %vm930, %v874, -inf
        %932 = vmax.xlane.f32.xlu0 %v931
        %v933 = vpop.xlane.xlu0 %932
        %v934 = vsel %vm930, %v877, -inf
        %935 = vmax.xlane.f32.xlu0 %v934
        %v936 = vpop.xlane.xlu0 %935
        %v937 = vsel %vm930, %v924, -inf
        %938 = vmax.xlane.f32.xlu0 %v937
        %v939 = vpop.xlane.xlu0 %938
        %v940 = vsel %vm930, %v927, -inf
        %941 = vmax.xlane.f32.xlu0 %v940
        %v942 = vpop.xlane.xlu0 %941
        %v943 = vsub.f32 %v874, %v933
        %v944 = vsub.f32 %v877, %v936
        %v945 = vsub.f32 %v924, %v939
        %v946 = vsub.f32 %v927, %v942
        %v947 = vmul.f32 %v943, 1.442695
        %v948 = vpow.pop %v947
        %v949 = vmul.f32 %v944, 1.442695
        %v950 = vpow.pop %v949
        %v951 = vmul.f32 %v945, 1.442695
        %v952 = vpow.pop %v951
        %v953 = vmul.f32 %v946, 1.442695
        %v954 = vpow.pop %v953
        %v955 = vsel %vm930, %v948, 0.0
        %956 = vadd.xlane.f32.xlu0 %v955
        %v957 = vpop.xlane.xlu0 %956
        %v958 = vsel %vm930, %v950, 0.0
        %959 = vadd.xlane.f32.xlu0 %v958
        %v960 = vpop.xlane.xlu0 %959
        %v961 = vsel %vm930, %v952, 0.0
        %962 = vadd.xlane.f32.xlu0 %v961
        %v963 = vpop.xlane.xlu0 %962
        %v964 = vsel %vm930, %v954, 0.0
        %965 = vadd.xlane.f32.xlu0 %v964
        %v966 = vpop.xlane.xlu0 %965
        %v967 = vrcp.pop %v957
        %v968 = vrcp.pop %v960
        %v969 = vrcp.pop %v963
        %v970 = vrcp.pop %v966
        %v971 = vmul.f32 %v948, %v967
        %v972 = vmul.f32 %v950, %v968
        %v973 = vmul.f32 %v952, %v969
        %v974 = vmul.f32 %v954, %v970
        %v975 = vpack.c.bf16 %v972, %v971
        %v976 = vpack.c.bf16 %v974, %v973
        %977 = vrot.lane.b32.xlu0 %v827, 64
        %v978 = vpop.permute.xlu0 %977
        %v981 = vsel %vm930, %v975, 0
        %983 = vmatprep.subr.bf16.mxu0 0
        %984 = vmatpush1.bf16.msra.mxu0 %v978
        %985 = vmatprep.subr.bf16.mxu0 0
        %986 = vmatpush1.bf16.msra.mxu0 0
        %987 = vmatprep.subr.bf16.mxu0 0
        %988 = vmatpush1.bf16.msra.mxu0 0
        %989 = vmatprep.subr.bf16.mxu0 0
        %990 = vmatpush1.bf16.msra.mxu0 0
        %991 = vmatprep.subr.bf16.mxu0 0
        %992 = vmatpush1.bf16.msra.mxu0 0
        %993 = vmatprep.subr.bf16.mxu0 0
        %994 = vmatpush1.bf16.msra.mxu0 0
        %995 = vmatprep.subr.bf16.mxu0 0
        %996 = vmatpush1.bf16.msra.mxu0 0
        %997 = vmatprep.subr.bf16.mxu0 0
        %998 = vmatpush1.bf16.msra.mxu0 0
        %999 = vmatprep.subr.bf16.mxu0 0
        %1000 = vmatpush1.bf16.msra.mxu0 0
        %1001 = vmatprep.subr.bf16.mxu0 0
        %1002 = vmatpush1.bf16.msra.mxu0 0
        %1003 = vmatprep.subr.bf16.mxu0 0
        %1004 = vmatpush1.bf16.msra.mxu0 0
        %1005 = vmatprep.subr.bf16.mxu0 0
        %1006 = vmatpush1.bf16.msra.mxu0 0
        %1007 = vmatprep.subr.bf16.mxu0 0
        %1008 = vmatpush1.bf16.msra.mxu0 0
        %1009 = vmatprep.subr.bf16.mxu0 0
        %1010 = vmatpush1.bf16.msra.mxu0 0
        %1011 = vmatprep.subr.bf16.mxu0 0
        %1012 = vmatpush1.bf16.msra.mxu0 0
        %1013 = vmatprep.subr.bf16.mxu0 0
        %1014 = vmatpush1.bf16.msra.mxu0 0
        %1015 = vmatprep.mubr.bf16.mxu0 0
        %1016 = vmatmul.mubr.bf16.gmra.mrb[0].mxu0 %v981
        %v1017 = vpop.f32.mrb[0].mxu0
        %v1018 = vadd.f32 0.0, %v1017
        %v1019 = vpop.f32.mrb[0].mxu0
        %v1020 = vpop.f32.mrb[0].mxu0
        %v1021 = vadd.f32 0.0, %v1020
        %v1022 = vpop.f32.mrb[0].mxu0
        %1023 = vdwg.mxu0
        %1024 = vrot.lane.b32.xlu0 %v828, 64
        %v1025 = vpop.permute.xlu0 %1024
        %v1028 = vsel %vm930, %v976, 0
        %1030 = vmatprep.subr.bf16.mxu0 0
        %1031 = vmatpush1.bf16.msra.mxu0 %v1025
        %1032 = vmatprep.subr.bf16.mxu0 0
        %1033 = vmatpush1.bf16.msra.mxu0 0
        %1034 = vmatprep.subr.bf16.mxu0 0
        %1035 = vmatpush1.bf16.msra.mxu0 0
        %1036 = vmatprep.subr.bf16.mxu0 0
        %1037 = vmatpush1.bf16.msra.mxu0 0
        %1038 = vmatprep.subr.bf16.mxu0 0
        %1039 = vmatpush1.bf16.msra.mxu0 0
        %1040 = vmatprep.subr.bf16.mxu0 0
        %1041 = vmatpush1.bf16.msra.mxu0 0
        %1042 = vmatprep.subr.bf16.mxu0 0
        %1043 = vmatpush1.bf16.msra.mxu0 0
        %1044 = vmatprep.subr.bf16.mxu0 0
        %1045 = vmatpush1.bf16.msra.mxu0 0
        %1046 = vmatprep.subr.bf16.mxu0 0
        %1047 = vmatpush1.bf16.msra.mxu0 0
        %1048 = vmatprep.subr.bf16.mxu0 0
        %1049 = vmatpush1.bf16.msra.mxu0 0
        %1050 = vmatprep.subr.bf16.mxu0 0
        %1051 = vmatpush1.bf16.msra.mxu0 0
        %1052 = vmatprep.subr.bf16.mxu0 0
        %1053 = vmatpush1.bf16.msra.mxu0 0
        %1054 = vmatprep.subr.bf16.mxu0 0
        %1055 = vmatpush1.bf16.msra.mxu0 0
        %1056 = vmatprep.subr.bf16.mxu0 0
        %1057 = vmatpush1.bf16.msra.mxu0 0
        %1058 = vmatprep.subr.bf16.mxu0 0
        %1059 = vmatpush1.bf16.msra.mxu0 0
        %1060 = vmatprep.subr.bf16.mxu0 0
        %1061 = vmatpush1.bf16.msra.mxu0 0
        %1062 = vmatprep.mubr.bf16.mxu0 0
        %1063 = vmatmul.mubr.bf16.gmra.mrb[0].mxu0 %v1028
        %v1064 = vpop.f32.mrb[0].mxu0
        %v1065 = vadd.f32 0.0, %v1064
        %v1066 = vpop.f32.mrb[0].mxu0
        %v1067 = vpop.f32.mrb[0].mxu0
        %v1068 = vadd.f32 0.0, %v1067
        %v1069 = vpop.f32.mrb[0].mxu0
        %1070 = vdwg.mxu0
        %1071 = vrot.lane.b32.xlu0 %v827, 120
        %v1072 = vpop.permute.xlu0 %1071
        %1073 = vrot.lane.b32.xlu0 %v827, 88
        %v1074 = vpop.permute.xlu0 %1073
        %v1076 = vsel %vm832, %v1072, 0
        %v1079 = vsel %vm832, %v1074, 0
        %1081 = vmatprep.subr.bf16.mxu0 0
        %1082 = vmatpush1.bf16.xpose.msra.mxu0 %v1079
        %1083 = vmatprep.subr.bf16.mxu0 0
        %1084 = vmatpush1.bf16.xpose.msra.mxu0 0
        %1085 = vmatprep.subr.bf16.mxu0 0
        %1086 = vmatpush1.bf16.xpose.msra.mxu0 0
        %1087 = vmatprep.subr.bf16.mxu0 0
        %1088 = vmatpush1.bf16.xpose.msra.mxu0 0
        %1089 = vmatprep.subr.bf16.mxu0 0
        %1090 = vmatpush1.bf16.xpose.msra.mxu0 0
        %1091 = vmatprep.subr.bf16.mxu0 0
        %1092 = vmatpush1.bf16.xpose.msra.mxu0 0
        %1093 = vmatprep.subr.bf16.mxu0 0
        %1094 = vmatpush1.bf16.xpose.msra.mxu0 0
        %1095 = vmatprep.subr.bf16.mxu0 0
        %1096 = vmatpush1.bf16.xpose.msra.mxu0 0
        %1097 = vmatprep.subr.bf16.mxu0 0
        %1098 = vmatpush1.bf16.xpose.msra.mxu0 0
        %1099 = vmatprep.subr.bf16.mxu0 0
        %1100 = vmatpush1.bf16.xpose.msra.mxu0 0
        %1101 = vmatprep.subr.bf16.mxu0 0
        %1102 = vmatpush1.bf16.xpose.msra.mxu0 0
        %1103 = vmatprep.subr.bf16.mxu0 0
        %1104 = vmatpush1.bf16.xpose.msra.mxu0 0
        %1105 = vmatprep.subr.bf16.mxu0 0
        %1106 = vmatpush1.bf16.xpose.msra.mxu0 0
        %1107 = vmatprep.subr.bf16.mxu0 0
        %1108 = vmatpush1.bf16.xpose.msra.mxu0 0
        %1109 = vmatprep.subr.bf16.mxu0 0
        %1110 = vmatpush1.bf16.xpose.msra.mxu0 0
        %1111 = vmatprep.subr.bf16.mxu0 0
        %1112 = vmatpush1.bf16.xpose.msra.mxu0 0
        %1113 = vmatprep.mubr.bf16.mxu0 0
        %1114 = vmatmul.mubr.bf16.gmra.mrb[0].mxu0 %v1076
        %v1115 = vpop.f32.mrb[0].mxu0
        %v1116 = vadd.f32 0.0, %v1115
        %v1117 = vpop.f32.mrb[0].mxu0
        %v1118 = vpop.f32.mrb[0].mxu0
        %v1119 = vadd.f32 0.0, %v1118
        %v1120 = vpop.f32.mrb[0].mxu0
        %1121 = vdwg.mxu0
        %1122 = vrot.lane.b32.xlu0 %v828, 120
        %v1123 = vpop.permute.xlu0 %1122
        %1124 = vrot.lane.b32.xlu0 %v828, 88
        %v1125 = vpop.permute.xlu0 %1124
        %v1127 = vsel %vm832, %v1123, 0
        %v1130 = vsel %vm832, %v1125, 0
        %1132 = vmatprep.subr.bf16.mxu0 0
        %1133 = vmatpush1.bf16.xpose.msra.mxu0 %v1130
        %1134 = vmatprep.subr.bf16.mxu0 0
        %1135 = vmatpush1.bf16.xpose.msra.mxu0 0
        %1136 = vmatprep.subr.bf16.mxu0 0
        %1137 = vmatpush1.bf16.xpose.msra.mxu0 0
        %1138 = vmatprep.subr.bf16.mxu0 0
        %1139 = vmatpush1.bf16.xpose.msra.mxu0 0
        %1140 = vmatprep.subr.bf16.mxu0 0
        %1141 = vmatpush1.bf16.xpose.msra.mxu0 0
        %1142 = vmatprep.subr.bf16.mxu0 0
        %1143 = vmatpush1.bf16.xpose.msra.mxu0 0
        %1144 = vmatprep.subr.bf16.mxu0 0
        %1145 = vmatpush1.bf16.xpose.msra.mxu0 0
        %1146 = vmatprep.subr.bf16.mxu0 0
        %1147 = vmatpush1.bf16.xpose.msra.mxu0 0
        %1148 = vmatprep.subr.bf16.mxu0 0
        %1149 = vmatpush1.bf16.xpose.msra.mxu0 0
        %1150 = vmatprep.subr.bf16.mxu0 0
        %1151 = vmatpush1.bf16.xpose.msra.mxu0 0
        %1152 = vmatprep.subr.bf16.mxu0 0
        %1153 = vmatpush1.bf16.xpose.msra.mxu0 0
        %1154 = vmatprep.subr.bf16.mxu0 0
        %1155 = vmatpush1.bf16.xpose.msra.mxu0 0
        %1156 = vmatprep.subr.bf16.mxu0 0
        %1157 = vmatpush1.bf16.xpose.msra.mxu0 0
        %1158 = vmatprep.subr.bf16.mxu0 0
        %1159 = vmatpush1.bf16.xpose.msra.mxu0 0
        %1160 = vmatprep.subr.bf16.mxu0 0
        %1161 = vmatpush1.bf16.xpose.msra.mxu0 0
        %1162 = vmatprep.subr.bf16.mxu0 0
        %1163 = vmatpush1.bf16.xpose.msra.mxu0 0
        %1164 = vmatprep.mubr.bf16.mxu0 0
        %1165 = vmatmul.mubr.bf16.gmra.mrb[0].mxu0 %v1127
        %v1166 = vpop.f32.mrb[0].mxu0
        %v1167 = vadd.f32 0.0, %v1166
        %v1168 = vpop.f32.mrb[0].mxu0
        %v1169 = vpop.f32.mrb[0].mxu0
        %v1170 = vadd.f32 0.0, %v1169
        %v1171 = vpop.f32.mrb[0].mxu0
        %1172 = vdwg.mxu0
        %v1173 = vsel %vm930, %v1116, -inf
        %1174 = vmax.xlane.f32.xlu0 %v1173
        %v1175 = vpop.xlane.xlu0 %1174
        %v1176 = vsel %vm930, %v1119, -inf
        %1177 = vmax.xlane.f32.xlu0 %v1176
        %v1178 = vpop.xlane.xlu0 %1177
        %v1179 = vsel %vm930, %v1167, -inf
        %1180 = vmax.xlane.f32.xlu0 %v1179
        %v1181 = vpop.xlane.xlu0 %1180
        %v1182 = vsel %vm930, %v1170, -inf
        %1183 = vmax.xlane.f32.xlu0 %v1182
        %v1184 = vpop.xlane.xlu0 %1183
        %v1185 = vsub.f32 %v1116, %v1175
        %v1186 = vsub.f32 %v1119, %v1178
        %v1187 = vsub.f32 %v1167, %v1181
        %v1188 = vsub.f32 %v1170, %v1184
        %v1189 = vmul.f32 %v1185, 1.442695
        %v1190 = vpow.pop %v1189
        %v1191 = vmul.f32 %v1186, 1.442695
        %v1192 = vpow.pop %v1191
        %v1193 = vmul.f32 %v1187, 1.442695
        %v1194 = vpow.pop %v1193
        %v1195 = vmul.f32 %v1188, 1.442695
        %v1196 = vpow.pop %v1195
        %v1197 = vsel %vm930, %v1190, 0.0
        %1198 = vadd.xlane.f32.xlu0 %v1197
        %v1199 = vpop.xlane.xlu0 %1198
        %v1200 = vsel %vm930, %v1192, 0.0
        %1201 = vadd.xlane.f32.xlu0 %v1200
        %v1202 = vpop.xlane.xlu0 %1201
        %v1203 = vsel %vm930, %v1194, 0.0
        %1204 = vadd.xlane.f32.xlu0 %v1203
        %v1205 = vpop.xlane.xlu0 %1204
        %v1206 = vsel %vm930, %v1196, 0.0
        %1207 = vadd.xlane.f32.xlu0 %v1206
        %v1208 = vpop.xlane.xlu0 %1207
        %v1209 = vrcp.pop %v1199
        %v1210 = vrcp.pop %v1202
        %v1211 = vrcp.pop %v1205
        %v1212 = vrcp.pop %v1208
        %v1213 = vmul.f32 %v1190, %v1209
        %v1214 = vmul.f32 %v1192, %v1210
        %v1215 = vmul.f32 %v1194, %v1211
        %v1216 = vmul.f32 %v1196, %v1212
        %v1217 = vpack.c.bf16 %v1214, %v1213
        %v1218 = vpack.c.bf16 %v1216, %v1215
        %1219 = vrot.lane.b32.xlu0 %v827, 56
        %v1220 = vpop.permute.xlu0 %1219
        %v1223 = vsel %vm930, %v1217, 0
        %1225 = vmatprep.subr.bf16.mxu0 0
        %1226 = vmatpush1.bf16.msra.mxu0 %v1220
        %1227 = vmatprep.subr.bf16.mxu0 0
        %1228 = vmatpush1.bf16.msra.mxu0 0
        %1229 = vmatprep.subr.bf16.mxu0 0
        %1230 = vmatpush1.bf16.msra.mxu0 0
        %1231 = vmatprep.subr.bf16.mxu0 0
        %1232 = vmatpush1.bf16.msra.mxu0 0
        %1233 = vmatprep.subr.bf16.mxu0 0
        %1234 = vmatpush1.bf16.msra.mxu0 0
        %1235 = vmatprep.subr.bf16.mxu0 0
        %1236 = vmatpush1.bf16.msra.mxu0 0
        %1237 = vmatprep.subr.bf16.mxu0 0
        %1238 = vmatpush1.bf16.msra.mxu0 0
        %1239 = vmatprep.subr.bf16.mxu0 0
        %1240 = vmatpush1.bf16.msra.mxu0 0
        %1241 = vmatprep.subr.bf16.mxu0 0
        %1242 = vmatpush1.bf16.msra.mxu0 0
        %1243 = vmatprep.subr.bf16.mxu0 0
        %1244 = vmatpush1.bf16.msra.mxu0 0
        %1245 = vmatprep.subr.bf16.mxu0 0
        %1246 = vmatpush1.bf16.msra.mxu0 0
        %1247 = vmatprep.subr.bf16.mxu0 0
        %1248 = vmatpush1.bf16.msra.mxu0 0
        %1249 = vmatprep.subr.bf16.mxu0 0
        %1250 = vmatpush1.bf16.msra.mxu0 0
        %1251 = vmatprep.subr.bf16.mxu0 0
        %1252 = vmatpush1.bf16.msra.mxu0 0
        %1253 = vmatprep.subr.bf16.mxu0 0
        %1254 = vmatpush1.bf16.msra.mxu0 0
        %1255 = vmatprep.subr.bf16.mxu0 0
        %1256 = vmatpush1.bf16.msra.mxu0 0
        %1257 = vmatprep.mubr.bf16.mxu0 0
        %1258 = vmatmul.mubr.bf16.gmra.mrb[0].mxu0 %v1223
        %v1259 = vpop.f32.mrb[0].mxu0
        %v1260 = vadd.f32 0.0, %v1259
        %v1261 = vpop.f32.mrb[0].mxu0
        %v1262 = vpop.f32.mrb[0].mxu0
        %v1263 = vadd.f32 0.0, %v1262
        %v1264 = vpop.f32.mrb[0].mxu0
        %1265 = vdwg.mxu0
        %1266 = vrot.lane.b32.xlu0 %v828, 56
        %v1267 = vpop.permute.xlu0 %1266
        %v1270 = vsel %vm930, %v1218, 0
        %1272 = vmatprep.subr.bf16.mxu0 0
        %1273 = vmatpush1.bf16.msra.mxu0 %v1267
        %1274 = vmatprep.subr.bf16.mxu0 0
        %1275 = vmatpush1.bf16.msra.mxu0 0
        %1276 = vmatprep.subr.bf16.mxu0 0
        %1277 = vmatpush1.bf16.msra.mxu0 0
        %1278 = vmatprep.subr.bf16.mxu0 0
        %1279 = vmatpush1.bf16.msra.mxu0 0
        %1280 = vmatprep.subr.bf16.mxu0 0
        %1281 = vmatpush1.bf16.msra.mxu0 0
        %1282 = vmatprep.subr.bf16.mxu0 0
        %1283 = vmatpush1.bf16.msra.mxu0 0
        %1284 = vmatprep.subr.bf16.mxu0 0
        %1285 = vmatpush1.bf16.msra.mxu0 0
        %1286 = vmatprep.subr.bf16.mxu0 0
        %1287 = vmatpush1.bf16.msra.mxu0 0
        %1288 = vmatprep.subr.bf16.mxu0 0
        %1289 = vmatpush1.bf16.msra.mxu0 0
        %1290 = vmatprep.subr.bf16.mxu0 0
        %1291 = vmatpush1.bf16.msra.mxu0 0
        %1292 = vmatprep.subr.bf16.mxu0 0
        %1293 = vmatpush1.bf16.msra.mxu0 0
        %1294 = vmatprep.subr.bf16.mxu0 0
        %1295 = vmatpush1.bf16.msra.mxu0 0
        %1296 = vmatprep.subr.bf16.mxu0 0
        %1297 = vmatpush1.bf16.msra.mxu0 0
        %1298 = vmatprep.subr.bf16.mxu0 0
        %1299 = vmatpush1.bf16.msra.mxu0 0
        %1300 = vmatprep.subr.bf16.mxu0 0
        %1301 = vmatpush1.bf16.msra.mxu0 0
        %1302 = vmatprep.subr.bf16.mxu0 0
        %1303 = vmatpush1.bf16.msra.mxu0 0
        %1304 = vmatprep.mubr.bf16.mxu0 0
        %1305 = vmatmul.mubr.bf16.gmra.mrb[0].mxu0 %v1270
        %v1306 = vpop.f32.mrb[0].mxu0
        %v1307 = vadd.f32 0.0, %v1306
        %v1308 = vpop.f32.mrb[0].mxu0
        %v1309 = vpop.f32.mrb[0].mxu0
        %v1310 = vadd.f32 0.0, %v1309
        %v1311 = vpop.f32.mrb[0].mxu0
        %1312 = vdwg.mxu0
        %1313 = vrot.lane.b32.xlu0 %v827, 112
        %v1314 = vpop.permute.xlu0 %1313
        %1315 = vrot.lane.b32.xlu0 %v827, 80
        %v1316 = vpop.permute.xlu0 %1315
        %v1318 = vsel %vm832, %v1314, 0
        %v1321 = vsel %vm832, %v1316, 0
        %1323 = vmatprep.subr.bf16.mxu0 0
        %1324 = vmatpush1.bf16.xpose.msra.mxu0 %v1321
        %1325 = vmatprep.subr.bf16.mxu0 0
        %1326 = vmatpush1.bf16.xpose.msra.mxu0 0
        %1327 = vmatprep.subr.bf16.mxu0 0
        %1328 = vmatpush1.bf16.xpose.msra.mxu0 0
        %1329 = vmatprep.subr.bf16.mxu0 0
        %1330 = vmatpush1.bf16.xpose.msra.mxu0 0
        %1331 = vmatprep.subr.bf16.mxu0 0
        %1332 = vmatpush1.bf16.xpose.msra.mxu0 0
        %1333 = vmatprep.subr.bf16.mxu0 0
        %1334 = vmatpush1.bf16.xpose.msra.mxu0 0
        %1335 = vmatprep.subr.bf16.mxu0 0
        %1336 = vmatpush1.bf16.xpose.msra.mxu0 0
        %1337 = vmatprep.subr.bf16.mxu0 0
        %1338 = vmatpush1.bf16.xpose.msra.mxu0 0
        %1339 = vmatprep.subr.bf16.mxu0 0
        %1340 = vmatpush1.bf16.xpose.msra.mxu0 0
        %1341 = vmatprep.subr.bf16.mxu0 0
        %1342 = vmatpush1.bf16.xpose.msra.mxu0 0
        %1343 = vmatprep.subr.bf16.mxu0 0
        %1344 = vmatpush1.bf16.xpose.msra.mxu0 0
        %1345 = vmatprep.subr.bf16.mxu0 0
        %1346 = vmatpush1.bf16.xpose.msra.mxu0 0
        %1347 = vmatprep.subr.bf16.mxu0 0
        %1348 = vmatpush1.bf16.xpose.msra.mxu0 0
        %1349 = vmatprep.subr.bf16.mxu0 0
        %1350 = vmatpush1.bf16.xpose.msra.mxu0 0
        %1351 = vmatprep.subr.bf16.mxu0 0
        %1352 = vmatpush1.bf16.xpose.msra.mxu0 0
        %1353 = vmatprep.subr.bf16.mxu0 0
        %1354 = vmatpush1.bf16.xpose.msra.mxu0 0
        %1355 = vmatprep.mubr.bf16.mxu0 0
        %1356 = vmatmul.mubr.bf16.gmra.mrb[0].mxu0 %v1318
        %v1357 = vpop.f32.mrb[0].mxu0
        %v1358 = vadd.f32 0.0, %v1357
        %v1359 = vpop.f32.mrb[0].mxu0
        %v1360 = vpop.f32.mrb[0].mxu0
        %v1361 = vadd.f32 0.0, %v1360
        %v1362 = vpop.f32.mrb[0].mxu0
        %1363 = vdwg.mxu0
        %1364 = vrot.lane.b32.xlu0 %v828, 112
        %v1365 = vpop.permute.xlu0 %1364
        %1366 = vrot.lane.b32.xlu0 %v828, 80
        %v1367 = vpop.permute.xlu0 %1366
        %v1369 = vsel %vm832, %v1365, 0
        %v1372 = vsel %vm832, %v1367, 0
        %1374 = vmatprep.subr.bf16.mxu0 0
        %1375 = vmatpush1.bf16.xpose.msra.mxu0 %v1372
        %1376 = vmatprep.subr.bf16.mxu0 0
        %1377 = vmatpush1.bf16.xpose.msra.mxu0 0
        %1378 = vmatprep.subr.bf16.mxu0 0
        %1379 = vmatpush1.bf16.xpose.msra.mxu0 0
        %1380 = vmatprep.subr.bf16.mxu0 0
        %1381 = vmatpush1.bf16.xpose.msra.mxu0 0
        %1382 = vmatprep.subr.bf16.mxu0 0
        %1383 = vmatpush1.bf16.xpose.msra.mxu0 0
        %1384 = vmatprep.subr.bf16.mxu0 0
        %1385 = vmatpush1.bf16.xpose.msra.mxu0 0
        %1386 = vmatprep.subr.bf16.mxu0 0
        %1387 = vmatpush1.bf16.xpose.msra.mxu0 0
        %1388 = vmatprep.subr.bf16.mxu0 0
        %1389 = vmatpush1.bf16.xpose.msra.mxu0 0
        %1390 = vmatprep.subr.bf16.mxu0 0
        %1391 = vmatpush1.bf16.xpose.msra.mxu0 0
        %1392 = vmatprep.subr.bf16.mxu0 0
        %1393 = vmatpush1.bf16.xpose.msra.mxu0 0
        %1394 = vmatprep.subr.bf16.mxu0 0
        %1395 = vmatpush1.bf16.xpose.msra.mxu0 0
        %1396 = vmatprep.subr.bf16.mxu0 0
        %1397 = vmatpush1.bf16.xpose.msra.mxu0 0
        %1398 = vmatprep.subr.bf16.mxu0 0
        %1399 = vmatpush1.bf16.xpose.msra.mxu0 0
        %1400 = vmatprep.subr.bf16.mxu0 0
        %1401 = vmatpush1.bf16.xpose.msra.mxu0 0
        %1402 = vmatprep.subr.bf16.mxu0 0
        %1403 = vmatpush1.bf16.xpose.msra.mxu0 0
        %1404 = vmatprep.subr.bf16.mxu0 0
        %1405 = vmatpush1.bf16.xpose.msra.mxu0 0
        %1406 = vmatprep.mubr.bf16.mxu0 0
        %1407 = vmatmul.mubr.bf16.gmra.mrb[0].mxu0 %v1369
        %v1408 = vpop.f32.mrb[0].mxu0
        %v1409 = vadd.f32 0.0, %v1408
        %v1410 = vpop.f32.mrb[0].mxu0
        %v1411 = vpop.f32.mrb[0].mxu0
        %v1412 = vadd.f32 0.0, %v1411
        %v1413 = vpop.f32.mrb[0].mxu0
        %1414 = vdwg.mxu0
        %v1415 = vsel %vm930, %v1358, -inf
        %1416 = vmax.xlane.f32.xlu0 %v1415
        %v1417 = vpop.xlane.xlu0 %1416
        %v1418 = vsel %vm930, %v1361, -inf
        %1419 = vmax.xlane.f32.xlu0 %v1418
        %v1420 = vpop.xlane.xlu0 %1419
        %v1421 = vsel %vm930, %v1409, -inf
        %1422 = vmax.xlane.f32.xlu0 %v1421
        %v1423 = vpop.xlane.xlu0 %1422
        %v1424 = vsel %vm930, %v1412, -inf
        %1425 = vmax.xlane.f32.xlu0 %v1424
        %v1426 = vpop.xlane.xlu0 %1425
        %v1427 = vsub.f32 %v1358, %v1417
        %v1428 = vsub.f32 %v1361, %v1420
        %v1429 = vsub.f32 %v1409, %v1423
        %v1430 = vsub.f32 %v1412, %v1426
        %v1431 = vmul.f32 %v1427, 1.442695
        %v1432 = vpow.pop %v1431
        %v1433 = vmul.f32 %v1428, 1.442695
        %v1434 = vpow.pop %v1433
        %v1435 = vmul.f32 %v1429, 1.442695
        %v1436 = vpow.pop %v1435
        %v1437 = vmul.f32 %v1430, 1.442695
        %v1438 = vpow.pop %v1437
        %v1439 = vsel %vm930, %v1432, 0.0
        %1440 = vadd.xlane.f32.xlu0 %v1439
        %v1441 = vpop.xlane.xlu0 %1440
        %v1442 = vsel %vm930, %v1434, 0.0
        %1443 = vadd.xlane.f32.xlu0 %v1442
        %v1444 = vpop.xlane.xlu0 %1443
        %v1445 = vsel %vm930, %v1436, 0.0
        %1446 = vadd.xlane.f32.xlu0 %v1445
        %v1447 = vpop.xlane.xlu0 %1446
        %v1448 = vsel %vm930, %v1438, 0.0
        %1449 = vadd.xlane.f32.xlu0 %v1448
        %v1450 = vpop.xlane.xlu0 %1449
        %v1451 = vrcp.pop %v1441
        %v1452 = vrcp.pop %v1444
        %v1453 = vrcp.pop %v1447
        %v1454 = vrcp.pop %v1450
        %v1455 = vmul.f32 %v1432, %v1451
        %v1456 = vmul.f32 %v1434, %v1452
        %v1457 = vmul.f32 %v1436, %v1453
        %v1458 = vmul.f32 %v1438, %v1454
        %v1459 = vpack.c.bf16 %v1456, %v1455
        %v1460 = vpack.c.bf16 %v1458, %v1457
        %1461 = vrot.lane.b32.xlu0 %v827, 48
        %v1462 = vpop.permute.xlu0 %1461
        %v1465 = vsel %vm930, %v1459, 0
        %1467 = vmatprep.subr.bf16.mxu0 0
        %1468 = vmatpush1.bf16.msra.mxu0 %v1462
        %1469 = vmatprep.subr.bf16.mxu0 0
        %1470 = vmatpush1.bf16.msra.mxu0 0
        %1471 = vmatprep.subr.bf16.mxu0 0
        %1472 = vmatpush1.bf16.msra.mxu0 0
        %1473 = vmatprep.subr.bf16.mxu0 0
        %1474 = vmatpush1.bf16.msra.mxu0 0
        %1475 = vmatprep.subr.bf16.mxu0 0
        %1476 = vmatpush1.bf16.msra.mxu0 0
        %1477 = vmatprep.subr.bf16.mxu0 0
        %1478 = vmatpush1.bf16.msra.mxu0 0
        %1479 = vmatprep.subr.bf16.mxu0 0
        %1480 = vmatpush1.bf16.msra.mxu0 0
        %1481 = vmatprep.subr.bf16.mxu0 0
        %1482 = vmatpush1.bf16.msra.mxu0 0
        %1483 = vmatprep.subr.bf16.mxu0 0
        %1484 = vmatpush1.bf16.msra.mxu0 0
        %1485 = vmatprep.subr.bf16.mxu0 0
        %1486 = vmatpush1.bf16.msra.mxu0 0
        %1487 = vmatprep.subr.bf16.mxu0 0
        %1488 = vmatpush1.bf16.msra.mxu0 0
        %1489 = vmatprep.subr.bf16.mxu0 0
        %1490 = vmatpush1.bf16.msra.mxu0 0
        %1491 = vmatprep.subr.bf16.mxu0 0
        %1492 = vmatpush1.bf16.msra.mxu0 0
        %1493 = vmatprep.subr.bf16.mxu0 0
        %1494 = vmatpush1.bf16.msra.mxu0 0
        %1495 = vmatprep.subr.bf16.mxu0 0
        %1496 = vmatpush1.bf16.msra.mxu0 0
        %1497 = vmatprep.subr.bf16.mxu0 0
        %1498 = vmatpush1.bf16.msra.mxu0 0
        %1499 = vmatprep.mubr.bf16.mxu0 0
        %1500 = vmatmul.mubr.bf16.gmra.mrb[0].mxu0 %v1465
        %v1501 = vpop.f32.mrb[0].mxu0
        %v1502 = vadd.f32 0.0, %v1501
        %v1503 = vpop.f32.mrb[0].mxu0
        %v1504 = vpop.f32.mrb[0].mxu0
        %v1505 = vadd.f32 0.0, %v1504
        %v1506 = vpop.f32.mrb[0].mxu0
        %1507 = vdwg.mxu0
        %1508 = vrot.lane.b32.xlu0 %v828, 48
        %v1509 = vpop.permute.xlu0 %1508
        %v1512 = vsel %vm930, %v1460, 0
        %1514 = vmatprep.subr.bf16.mxu0 0
        %1515 = vmatpush1.bf16.msra.mxu0 %v1509
        %1516 = vmatprep.subr.bf16.mxu0 0
        %1517 = vmatpush1.bf16.msra.mxu0 0
        %1518 = vmatprep.subr.bf16.mxu0 0
        %1519 = vmatpush1.bf16.msra.mxu0 0
        %1520 = vmatprep.subr.bf16.mxu0 0
        %1521 = vmatpush1.bf16.msra.mxu0 0
        %1522 = vmatprep.subr.bf16.mxu0 0
        %1523 = vmatpush1.bf16.msra.mxu0 0
        %1524 = vmatprep.subr.bf16.mxu0 0
        %1525 = vmatpush1.bf16.msra.mxu0 0
        %1526 = vmatprep.subr.bf16.mxu0 0
        %1527 = vmatpush1.bf16.msra.mxu0 0
        %1528 = vmatprep.subr.bf16.mxu0 0
        %1529 = vmatpush1.bf16.msra.mxu0 0
        %1530 = vmatprep.subr.bf16.mxu0 0
        %1531 = vmatpush1.bf16.msra.mxu0 0
        %1532 = vmatprep.subr.bf16.mxu0 0
        %1533 = vmatpush1.bf16.msra.mxu0 0
        %1534 = vmatprep.subr.bf16.mxu0 0
        %1535 = vmatpush1.bf16.msra.mxu0 0
        %1536 = vmatprep.subr.bf16.mxu0 0
        %1537 = vmatpush1.bf16.msra.mxu0 0
        %1538 = vmatprep.subr.bf16.mxu0 0
        %1539 = vmatpush1.bf16.msra.mxu0 0
        %1540 = vmatprep.subr.bf16.mxu0 0
        %1541 = vmatpush1.bf16.msra.mxu0 0
        %1542 = vmatprep.subr.bf16.mxu0 0
        %1543 = vmatpush1.bf16.msra.mxu0 0
        %1544 = vmatprep.subr.bf16.mxu0 0
        %1545 = vmatpush1.bf16.msra.mxu0 0
        %1546 = vmatprep.mubr.bf16.mxu0 0
        %1547 = vmatmul.mubr.bf16.gmra.mrb[0].mxu0 %v1512
        %v1548 = vpop.f32.mrb[0].mxu0
        %v1549 = vadd.f32 0.0, %v1548
        %v1550 = vpop.f32.mrb[0].mxu0
        %v1551 = vpop.f32.mrb[0].mxu0
        %v1552 = vadd.f32 0.0, %v1551
        %v1553 = vpop.f32.mrb[0].mxu0
        %1554 = vdwg.mxu0
        %1555 = vrot.lane.b32.xlu0 %v827, 104
        %v1556 = vpop.permute.xlu0 %1555
        %1557 = vrot.lane.b32.xlu0 %v827, 72
        %v1558 = vpop.permute.xlu0 %1557
        %v1560 = vsel %vm832, %v1556, 0
        %v1563 = vsel %vm832, %v1558, 0
        %1565 = vmatprep.subr.bf16.mxu0 0
        %1566 = vmatpush1.bf16.xpose.msra.mxu0 %v1563
        %1567 = vmatprep.subr.bf16.mxu0 0
        %1568 = vmatpush1.bf16.xpose.msra.mxu0 0
        %1569 = vmatprep.subr.bf16.mxu0 0
        %1570 = vmatpush1.bf16.xpose.msra.mxu0 0
        %1571 = vmatprep.subr.bf16.mxu0 0
        %1572 = vmatpush1.bf16.xpose.msra.mxu0 0
        %1573 = vmatprep.subr.bf16.mxu0 0
        %1574 = vmatpush1.bf16.xpose.msra.mxu0 0
        %1575 = vmatprep.subr.bf16.mxu0 0
        %1576 = vmatpush1.bf16.xpose.msra.mxu0 0
        %1577 = vmatprep.subr.bf16.mxu0 0
        %1578 = vmatpush1.bf16.xpose.msra.mxu0 0
        %1579 = vmatprep.subr.bf16.mxu0 0
        %1580 = vmatpush1.bf16.xpose.msra.mxu0 0
        %1581 = vmatprep.subr.bf16.mxu0 0
        %1582 = vmatpush1.bf16.xpose.msra.mxu0 0
        %1583 = vmatprep.subr.bf16.mxu0 0
        %1584 = vmatpush1.bf16.xpose.msra.mxu0 0
        %1585 = vmatprep.subr.bf16.mxu0 0
        %1586 = vmatpush1.bf16.xpose.msra.mxu0 0
        %1587 = vmatprep.subr.bf16.mxu0 0
        %1588 = vmatpush1.bf16.xpose.msra.mxu0 0
        %1589 = vmatprep.subr.bf16.mxu0 0
        %1590 = vmatpush1.bf16.xpose.msra.mxu0 0
        %1591 = vmatprep.subr.bf16.mxu0 0
        %1592 = vmatpush1.bf16.xpose.msra.mxu0 0
        %1593 = vmatprep.subr.bf16.mxu0 0
        %1594 = vmatpush1.bf16.xpose.msra.mxu0 0
        %1595 = vmatprep.subr.bf16.mxu0 0
        %1596 = vmatpush1.bf16.xpose.msra.mxu0 0
        %1597 = vmatprep.mubr.bf16.mxu0 0
        %1598 = vmatmul.mubr.bf16.gmra.mrb[0].mxu0 %v1560
        %v1599 = vpop.f32.mrb[0].mxu0
        %v1600 = vadd.f32 0.0, %v1599
        %v1601 = vpop.f32.mrb[0].mxu0
        %v1602 = vpop.f32.mrb[0].mxu0
        %v1603 = vadd.f32 0.0, %v1602
        %v1604 = vpop.f32.mrb[0].mxu0
        %1605 = vdwg.mxu0
        %1606 = vrot.lane.b32.xlu0 %v828, 104
        %v1607 = vpop.permute.xlu0 %1606
        %1608 = vrot.lane.b32.xlu0 %v828, 72
        %v1609 = vpop.permute.xlu0 %1608
        %v1611 = vsel %vm832, %v1607, 0
        %v1614 = vsel %vm832, %v1609, 0
        %1616 = vmatprep.subr.bf16.mxu0 0
        %1617 = vmatpush1.bf16.xpose.msra.mxu0 %v1614
        %1618 = vmatprep.subr.bf16.mxu0 0
        %1619 = vmatpush1.bf16.xpose.msra.mxu0 0
        %1620 = vmatprep.subr.bf16.mxu0 0
        %1621 = vmatpush1.bf16.xpose.msra.mxu0 0
        %1622 = vmatprep.subr.bf16.mxu0 0
        %1623 = vmatpush1.bf16.xpose.msra.mxu0 0
        %1624 = vmatprep.subr.bf16.mxu0 0
        %1625 = vmatpush1.bf16.xpose.msra.mxu0 0
        %1626 = vmatprep.subr.bf16.mxu0 0
        %1627 = vmatpush1.bf16.xpose.msra.mxu0 0
        %1628 = vmatprep.subr.bf16.mxu0 0
        %1629 = vmatpush1.bf16.xpose.msra.mxu0 0
        %1630 = vmatprep.subr.bf16.mxu0 0
        %1631 = vmatpush1.bf16.xpose.msra.mxu0 0
        %1632 = vmatprep.subr.bf16.mxu0 0
        %1633 = vmatpush1.bf16.xpose.msra.mxu0 0
        %1634 = vmatprep.subr.bf16.mxu0 0
        %1635 = vmatpush1.bf16.xpose.msra.mxu0 0
        %1636 = vmatprep.subr.bf16.mxu0 0
        %1637 = vmatpush1.bf16.xpose.msra.mxu0 0
        %1638 = vmatprep.subr.bf16.mxu0 0
        %1639 = vmatpush1.bf16.xpose.msra.mxu0 0
        %1640 = vmatprep.subr.bf16.mxu0 0
        %1641 = vmatpush1.bf16.xpose.msra.mxu0 0
        %1642 = vmatprep.subr.bf16.mxu0 0
        %1643 = vmatpush1.bf16.xpose.msra.mxu0 0
        %1644 = vmatprep.subr.bf16.mxu0 0
        %1645 = vmatpush1.bf16.xpose.msra.mxu0 0
        %1646 = vmatprep.subr.bf16.mxu0 0
        %1647 = vmatpush1.bf16.xpose.msra.mxu0 0
        %1648 = vmatprep.mubr.bf16.mxu0 0
        %1649 = vmatmul.mubr.bf16.gmra.mrb[0].mxu0 %v1611
        %v1650 = vpop.f32.mrb[0].mxu0
        %v1651 = vadd.f32 0.0, %v1650
        %v1652 = vpop.f32.mrb[0].mxu0
        %v1653 = vpop.f32.mrb[0].mxu0
        %v1654 = vadd.f32 0.0, %v1653
        %v1655 = vpop.f32.mrb[0].mxu0
        %1656 = vdwg.mxu0
        %v1657 = vsel %vm930, %v1600, -inf
        %1658 = vmax.xlane.f32.xlu0 %v1657
        %v1659 = vpop.xlane.xlu0 %1658
        %v1660 = vsel %vm930, %v1603, -inf
        %1661 = vmax.xlane.f32.xlu0 %v1660
        %v1662 = vpop.xlane.xlu0 %1661
        %v1663 = vsel %vm930, %v1651, -inf
        %1664 = vmax.xlane.f32.xlu0 %v1663
        %v1665 = vpop.xlane.xlu0 %1664
        %v1666 = vsel %vm930, %v1654, -inf
        %1667 = vmax.xlane.f32.xlu0 %v1666
        %v1668 = vpop.xlane.xlu0 %1667
        %v1669 = vsub.f32 %v1600, %v1659
        %v1670 = vsub.f32 %v1603, %v1662
        %v1671 = vsub.f32 %v1651, %v1665
        %v1672 = vsub.f32 %v1654, %v1668
        %v1673 = vmul.f32 %v1669, 1.442695
        %v1674 = vpow.pop %v1673
        %v1675 = vmul.f32 %v1670, 1.442695
        %v1676 = vpow.pop %v1675
        %v1677 = vmul.f32 %v1671, 1.442695
        %v1678 = vpow.pop %v1677
        %v1679 = vmul.f32 %v1672, 1.442695
        %v1680 = vpow.pop %v1679
        %v1681 = vsel %vm930, %v1674, 0.0
        %1682 = vadd.xlane.f32.xlu0 %v1681
        %v1683 = vpop.xlane.xlu0 %1682
        %v1684 = vsel %vm930, %v1676, 0.0
        %1685 = vadd.xlane.f32.xlu0 %v1684
        %v1686 = vpop.xlane.xlu0 %1685
        %v1687 = vsel %vm930, %v1678, 0.0
        %1688 = vadd.xlane.f32.xlu0 %v1687
        %v1689 = vpop.xlane.xlu0 %1688
        %v1690 = vsel %vm930, %v1680, 0.0
        %1691 = vadd.xlane.f32.xlu0 %v1690
        %v1692 = vpop.xlane.xlu0 %1691
        %v1693 = vrcp.pop %v1683
        %v1694 = vrcp.pop %v1686
        %v1695 = vrcp.pop %v1689
        %v1696 = vrcp.pop %v1692
        %v1697 = vmul.f32 %v1674, %v1693
        %v1698 = vmul.f32 %v1676, %v1694
        %v1699 = vmul.f32 %v1678, %v1695
        %v1700 = vmul.f32 %v1680, %v1696
        %v1701 = vpack.c.bf16 %v1698, %v1697
        %v1702 = vpack.c.bf16 %v1700, %v1699
        %1703 = vrot.lane.b32.xlu0 %v827, 40
        %v1704 = vpop.permute.xlu0 %1703
        %v1707 = vsel %vm930, %v1701, 0
        %1709 = vmatprep.subr.bf16.mxu0 0
        %1710 = vmatpush1.bf16.msra.mxu0 %v1704
        %1711 = vmatprep.subr.bf16.mxu0 0
        %1712 = vmatpush1.bf16.msra.mxu0 0
        %1713 = vmatprep.subr.bf16.mxu0 0
        %1714 = vmatpush1.bf16.msra.mxu0 0
        %1715 = vmatprep.subr.bf16.mxu0 0
        %1716 = vmatpush1.bf16.msra.mxu0 0
        %1717 = vmatprep.subr.bf16.mxu0 0
        %1718 = vmatpush1.bf16.msra.mxu0 0
        %1719 = vmatprep.subr.bf16.mxu0 0
        %1720 = vmatpush1.bf16.msra.mxu0 0
        %1721 = vmatprep.subr.bf16.mxu0 0
        %1722 = vmatpush1.bf16.msra.mxu0 0
        %1723 = vmatprep.subr.bf16.mxu0 0
        %1724 = vmatpush1.bf16.msra.mxu0 0
        %1725 = vmatprep.subr.bf16.mxu0 0
        %1726 = vmatpush1.bf16.msra.mxu0 0
        %1727 = vmatprep.subr.bf16.mxu0 0
        %1728 = vmatpush1.bf16.msra.mxu0 0
        %1729 = vmatprep.subr.bf16.mxu0 0
        %1730 = vmatpush1.bf16.msra.mxu0 0
        %1731 = vmatprep.subr.bf16.mxu0 0
        %1732 = vmatpush1.bf16.msra.mxu0 0
        %1733 = vmatprep.subr.bf16.mxu0 0
        %1734 = vmatpush1.bf16.msra.mxu0 0
        %1735 = vmatprep.subr.bf16.mxu0 0
        %1736 = vmatpush1.bf16.msra.mxu0 0
        %1737 = vmatprep.subr.bf16.mxu0 0
        %1738 = vmatpush1.bf16.msra.mxu0 0
        %1739 = vmatprep.subr.bf16.mxu0 0
        %1740 = vmatpush1.bf16.msra.mxu0 0
        %1741 = vmatprep.mubr.bf16.mxu0 0
        %1742 = vmatmul.mubr.bf16.gmra.mrb[0].mxu0 %v1707
        %v1743 = vpop.f32.mrb[0].mxu0
        %v1744 = vadd.f32 0.0, %v1743
        %v1745 = vpop.f32.mrb[0].mxu0
        %v1746 = vpop.f32.mrb[0].mxu0
        %v1747 = vadd.f32 0.0, %v1746
        %v1748 = vpop.f32.mrb[0].mxu0
        %1749 = vdwg.mxu0
        %1750 = vrot.lane.b32.xlu0 %v828, 40
        %v1751 = vpop.permute.xlu0 %1750
        %v1754 = vsel %vm930, %v1702, 0
        %1756 = vmatprep.subr.bf16.mxu0 0
        %1757 = vmatpush1.bf16.msra.mxu0 %v1751
        %1758 = vmatprep.subr.bf16.mxu0 0
        %1759 = vmatpush1.bf16.msra.mxu0 0
        %1760 = vmatprep.subr.bf16.mxu0 0
        %1761 = vmatpush1.bf16.msra.mxu0 0
        %1762 = vmatprep.subr.bf16.mxu0 0
        %1763 = vmatpush1.bf16.msra.mxu0 0
        %1764 = vmatprep.subr.bf16.mxu0 0
        %1765 = vmatpush1.bf16.msra.mxu0 0
        %1766 = vmatprep.subr.bf16.mxu0 0
        %1767 = vmatpush1.bf16.msra.mxu0 0
        %1768 = vmatprep.subr.bf16.mxu0 0
        %1769 = vmatpush1.bf16.msra.mxu0 0
        %1770 = vmatprep.subr.bf16.mxu0 0
        %1771 = vmatpush1.bf16.msra.mxu0 0
        %1772 = vmatprep.subr.bf16.mxu0 0
        %1773 = vmatpush1.bf16.msra.mxu0 0
        %1774 = vmatprep.subr.bf16.mxu0 0
        %1775 = vmatpush1.bf16.msra.mxu0 0
        %1776 = vmatprep.subr.bf16.mxu0 0
        %1777 = vmatpush1.bf16.msra.mxu0 0
        %1778 = vmatprep.subr.bf16.mxu0 0
        %1779 = vmatpush1.bf16.msra.mxu0 0
        %1780 = vmatprep.subr.bf16.mxu0 0
        %1781 = vmatpush1.bf16.msra.mxu0 0
        %1782 = vmatprep.subr.bf16.mxu0 0
        %1783 = vmatpush1.bf16.msra.mxu0 0
        %1784 = vmatprep.subr.bf16.mxu0 0
        %1785 = vmatpush1.bf16.msra.mxu0 0
        %1786 = vmatprep.subr.bf16.mxu0 0
        %1787 = vmatpush1.bf16.msra.mxu0 0
        %1788 = vmatprep.mubr.bf16.mxu0 0
        %1789 = vmatmul.mubr.bf16.gmra.mrb[0].mxu0 %v1754
        %v1790 = vpop.f32.mrb[0].mxu0
        %v1791 = vadd.f32 0.0, %v1790
        %v1792 = vpop.f32.mrb[0].mxu0
        %v1793 = vpop.f32.mrb[0].mxu0
        %v1794 = vadd.f32 0.0, %v1793
        %v1795 = vpop.f32.mrb[0].mxu0
        %1796 = vdwg.mxu0
        %1801 = vrot.lane.b32.xlu0 %v1260, 8
        %v1802 = vpop.permute.xlu0 %1801
        %1803 = vrot.lane.b32.xlu0 %v1263, 8
        %v1804 = vpop.permute.xlu0 %1803
        %1805 = vrot.lane.b32.xlu0 %v1307, 8
        %v1806 = vpop.permute.xlu0 %1805
        %1807 = vrot.lane.b32.xlu0 %v1310, 8
        %v1808 = vpop.permute.xlu0 %1807
        %1817 = vrot.lane.b32.xlu0 %v1502, 16
        %v1818 = vpop.permute.xlu0 %1817
        %1819 = vrot.lane.b32.xlu0 %v1505, 16
        %v1820 = vpop.permute.xlu0 %1819
        %1821 = vrot.lane.b32.xlu0 %v1549, 16
        %v1822 = vpop.permute.xlu0 %1821
        %1823 = vrot.lane.b32.xlu0 %v1552, 16
        %v1824 = vpop.permute.xlu0 %1823
        %1833 = vrot.lane.b32.xlu0 %v1744, 24
        %v1834 = vpop.permute.xlu0 %1833
        %1835 = vrot.lane.b32.xlu0 %v1747, 24
        %v1836 = vpop.permute.xlu0 %1835
        %1837 = vrot.lane.b32.xlu0 %v1791, 24
        %v1838 = vpop.permute.xlu0 %1837
        %1839 = vrot.lane.b32.xlu0 %v1794, 24
        %v1840 = vpop.permute.xlu0 %1839
        %v1845 = vsel %vm832, %v1018, %v1802
        %v1846 = vsel %vm832, %v1021, %v1804
        %v1847 = vsel %vm832, %v1065, %v1806
        %v1848 = vsel %vm832, %v1068, %v1808
        %v1849 = vsel %vm930, %v1845, %v1818
        %v1850 = vsel %vm930, %v1846, %v1820
        %v1851 = vsel %vm930, %v1847, %v1822
        %v1852 = vsel %vm930, %v1848, %v1824
        %vm1853 = vcmask 195584
        %v1854 = vsel %vm1853, %v1849, %v1834
        %v1855 = vsel %vm1853, %v1850, %v1836
        %v1856 = vsel %vm1853, %v1851, %v1838
        %v1857 = vsel %vm1853, %v1852, %v1840
        %v1858 = vpack.c.bf16 %v1855, %v1854
        %v1859 = vpack.c.bf16 %v1857, %v1856
        %v1860 = vld [vmem:[%s627] sm:$0xf]
        %v1861 = vld [vmem:[%s627 + $0x4] sm:$0xf]
        %v1862 = vld [vmem:[%s627 + $0x8] sm:$0xf]
        %v1863 = vld [vmem:[%s627 + $0xc] sm:$0xf]
        %v1864 = vld [vmem:[%s630] sm:$0x1]
        %v1866 = vlaneseq
        %v1867 = vshrl.u32 %v1866, 7
        %v1868 = vsub.s32 0, %v1867
        %v1869 = vrot.slane %v1864, %v1868
        %v1875 = vunpack.c.l.b16 %v1860
        %v1876 = vunpack.c.l.b16 %v1861
        %v1877 = vunpack.c.l.b16 %v1862
        %v1878 = vunpack.c.l.b16 %v1863
        %v1879 = vpack.c.b16 %v1876, %v1875
        %v1880 = vpack.c.b16 %v1878, %v1877
        %v1884 = vsel %vm673, %v1858, 0
        %v1887 = vsel %vm673, %v1859, 0
        %1889 = vmatprep.subr.bf16.mxu0 0
        %1890 = vmatpush1.bf16.msra.mxu0 %v1879
        %1891 = vmatprep.subr.bf16.mxu0 0
        %1892 = vmatpush1.bf16.msra.mxu0 %v1880
        %1893 = vmatprep.subr.bf16.mxu0 0
        %1894 = vmatpush1.bf16.msra.mxu0 0
        %1895 = vmatprep.subr.bf16.mxu0 0
        %1896 = vmatpush1.bf16.msra.mxu0 0
        %1897 = vmatprep.subr.bf16.mxu0 0
        %1898 = vmatpush1.bf16.msra.mxu0 0
        %1899 = vmatprep.subr.bf16.mxu0 0
        %1900 = vmatpush1.bf16.msra.mxu0 0
        %1901 = vmatprep.subr.bf16.mxu0 0
        %1902 = vmatpush1.bf16.msra.mxu0 0
        %1903 = vmatprep.subr.bf16.mxu0 0
        %1904 = vmatpush1.bf16.msra.mxu0 0
        %1905 = vmatprep.subr.bf16.mxu0 0
        %1906 = vmatpush1.bf16.msra.mxu0 0
        %1907 = vmatprep.subr.bf16.mxu0 0
        %1908 = vmatpush1.bf16.msra.mxu0 0
        %1909 = vmatprep.subr.bf16.mxu0 0
        %1910 = vmatpush1.bf16.msra.mxu0 0
        %1911 = vmatprep.subr.bf16.mxu0 0
        %1912 = vmatpush1.bf16.msra.mxu0 0
        %1913 = vmatprep.subr.bf16.mxu0 0
        %1914 = vmatpush1.bf16.msra.mxu0 0
        %1915 = vmatprep.subr.bf16.mxu0 0
        %1916 = vmatpush1.bf16.msra.mxu0 0
        %1917 = vmatprep.subr.bf16.mxu0 0
        %1918 = vmatpush1.bf16.msra.mxu0 0
        %1919 = vmatprep.subr.bf16.mxu0 0
        %1920 = vmatpush1.bf16.msra.mxu0 0
        %1921 = vmatprep.mubr.bf16.mxu0 0
        %1922 = vmatmul.mubr.bf16.gmra.mrb[0].mxu0 %v1884
        %v1923 = vpop.f32.mrb[0].mxu0
        %v1924 = vadd.f32 %v1869, %v1923
        %v1925 = vpop.f32.mrb[0].mxu0
        %v1926 = vpop.f32.mrb[0].mxu0
        %v1927 = vadd.f32 %v1869, %v1926
        %v1928 = vpop.f32.mrb[0].mxu0
        %1929 = vmatprep.mubr.bf16.mxu0 0
        %1930 = vmatmul.mubr.bf16.gmra.mrb[0].mxu0 %v1887
        %v1931 = vpop.f32.mrb[0].mxu0
        %v1932 = vadd.f32 %v1869, %v1931
        %v1933 = vpop.f32.mrb[0].mxu0
        %v1934 = vpop.f32.mrb[0].mxu0
        %v1935 = vadd.f32 %v1869, %v1934
        %v1936 = vpop.f32.mrb[0].mxu0
        %1937 = vdwg.mxu0
        %v1938 = vadd.f32 %v667, %v1924
        %v1939 = vadd.f32 %v668, %v1927
        %v1940 = vadd.f32 %v669, %v1932
        %v1941 = vadd.f32 %v670, %v1935
        %v1942 = vld [vmem:[%s633] sm:$0x1]
        %v1943 = vld [vmem:[%s636] sm:$0x1]
        %v1944 = vsel %vm673, %v1938, 0.0
        %1945 = vadd.xlane.f32.xlu0 %v1944
        %v1946 = vpop.xlane.xlu0 %1945
        %v1947 = vsel %vm673, %v1939, 0.0
        %1948 = vadd.xlane.f32.xlu0 %v1947
        %v1949 = vpop.xlane.xlu0 %1948
        %v1950 = vsel %vm673, %v1940, 0.0
        %1951 = vadd.xlane.f32.xlu0 %v1950
        %v1952 = vpop.xlane.xlu0 %1951
        %v1953 = vsel %vm673, %v1941, 0.0
        %1954 = vadd.xlane.f32.xlu0 %v1953
        %v1955 = vpop.xlane.xlu0 %1954
        %v1956 = vmul.f32 %v1946, %v686
        %v1957 = vmul.f32 %v1949, %v686
        %v1958 = vmul.f32 %v1952, %v686
        %v1959 = vmul.f32 %v1955, %v686
        %v1960 = vsub.f32 %v1938, %v1956
        %v1961 = vsub.f32 %v1939, %v1957
        %v1962 = vsub.f32 %v1940, %v1958
        %v1963 = vsub.f32 %v1941, %v1959
        %v1964 = vmul.f32 %v1960, %v1960
        %v1965 = vmul.f32 %v1961, %v1961
        %v1966 = vmul.f32 %v1962, %v1962
        %v1967 = vmul.f32 %v1963, %v1963
        %v1968 = vsel %vm673, %v1964, 0.0
        %1969 = vadd.xlane.f32.xlu0 %v1968
        %v1970 = vpop.xlane.xlu0 %1969
        %v1971 = vsel %vm673, %v1965, 0.0
        %1972 = vadd.xlane.f32.xlu0 %v1971
        %v1973 = vpop.xlane.xlu0 %1972
        %v1974 = vsel %vm673, %v1966, 0.0
        %1975 = vadd.xlane.f32.xlu0 %v1974
        %v1976 = vpop.xlane.xlu0 %1975
        %v1977 = vsel %vm673, %v1967, 0.0
        %1978 = vadd.xlane.f32.xlu0 %v1977
        %v1979 = vpop.xlane.xlu0 %1978
        %v1980 = vmul.f32 %v1970, %v686
        %v1981 = vmul.f32 %v1973, %v686
        %v1982 = vmul.f32 %v1976, %v686
        %v1983 = vmul.f32 %v1979, %v686
        %v1984 = vadd.f32 %v1980, 1e-05
        %v1985 = vadd.f32 %v1981, 1e-05
        %v1986 = vadd.f32 %v1982, 1e-05
        %v1987 = vadd.f32 %v1983, 1e-05
        %v1988 = vrsqrt.pop %v1984
        %v1989 = vrsqrt.pop %v1985
        %v1990 = vrsqrt.pop %v1986
        %v1991 = vrsqrt.pop %v1987
        %v1992 = vmul.f32 %v1960, %v1988
        %v1993 = vmul.f32 %v1961, %v1989
        %v1994 = vmul.f32 %v1962, %v1990
        %v1995 = vmul.f32 %v1963, %v1991
        %v1997 = vlaneseq
        %v1998 = vshrl.u32 %v1997, 7
        %v1999 = vsub.s32 0, %v1998
        %v2000 = vrot.slane %v1942, %v1999
        %v2002 = vmul.f32 %v1992, %v2000
        %v2003 = vmul.f32 %v1993, %v2000
        %v2004 = vmul.f32 %v1994, %v2000
        %v2005 = vmul.f32 %v1995, %v2000
        %v2007 = vlaneseq
        %v2008 = vshrl.u32 %v2007, 7
        %v2009 = vsub.s32 0, %v2008
        %v2010 = vrot.slane %v1943, %v2009
        %v2012 = vadd.f32 %v2002, %v2010
        %v2013 = vadd.f32 %v2003, %v2010
        %v2014 = vadd.f32 %v2004, %v2010
        %v2015 = vadd.f32 %v2005, %v2010
        %v2016 = vpack.c.bf16 %v2013, %v2012
        %v2017 = vpack.c.bf16 %v2015, %v2014
        %v2018 = vld [vmem:[%s641] sm:$0xf]
        %v2019 = vld [vmem:[%s641 + $0x4] sm:$0xf]
        %v2020 = vld [vmem:[%s641 + $0x8] sm:$0xf]
        %v2021 = vld [vmem:[%s641 + $0xc] sm:$0xf]
        %v2022 = vld [vmem:[%s644] sm:$0x1]
        %v2024 = vlaneseq
        %v2025 = vshrl.u32 %v2024, 7
        %v2026 = vsub.s32 0, %v2025
        %v2027 = vrot.slane %v2022, %v2026
        %v2033 = vunpack.c.l.b16 %v2018
        %v2034 = vunpack.c.l.b16 %v2019
        %v2035 = vunpack.c.l.b16 %v2020
        %v2036 = vunpack.c.l.b16 %v2021
        %v2037 = vpack.c.b16 %v2034, %v2033
        %v2038 = vpack.c.b16 %v2036, %v2035
        %v2042 = vsel %vm673, %v2016, 0
        %v2045 = vsel %vm673, %v2017, 0
        %2047 = vmatprep.subr.bf16.mxu0 0
        %2048 = vmatpush1.bf16.msra.mxu0 %v2037
        %2049 = vmatprep.subr.bf16.mxu0 0
        %2050 = vmatpush1.bf16.msra.mxu0 %v2038
        %2051 = vmatprep.subr.bf16.mxu0 0
        %2052 = vmatpush1.bf16.msra.mxu0 0
        %2053 = vmatprep.subr.bf16.mxu0 0
        %2054 = vmatpush1.bf16.msra.mxu0 0
        %2055 = vmatprep.subr.bf16.mxu0 0
        %2056 = vmatpush1.bf16.msra.mxu0 0
        %2057 = vmatprep.subr.bf16.mxu0 0
        %2058 = vmatpush1.bf16.msra.mxu0 0
        %2059 = vmatprep.subr.bf16.mxu0 0
        %2060 = vmatpush1.bf16.msra.mxu0 0
        %2061 = vmatprep.subr.bf16.mxu0 0
        %2062 = vmatpush1.bf16.msra.mxu0 0
        %2063 = vmatprep.subr.bf16.mxu0 0
        %2064 = vmatpush1.bf16.msra.mxu0 0
        %2065 = vmatprep.subr.bf16.mxu0 0
        %2066 = vmatpush1.bf16.msra.mxu0 0
        %2067 = vmatprep.subr.bf16.mxu0 0
        %2068 = vmatpush1.bf16.msra.mxu0 0
        %2069 = vmatprep.subr.bf16.mxu0 0
        %2070 = vmatpush1.bf16.msra.mxu0 0
        %2071 = vmatprep.subr.bf16.mxu0 0
        %2072 = vmatpush1.bf16.msra.mxu0 0
        %2073 = vmatprep.subr.bf16.mxu0 0
        %2074 = vmatpush1.bf16.msra.mxu0 0
        %2075 = vmatprep.subr.bf16.mxu0 0
        %2076 = vmatpush1.bf16.msra.mxu0 0
        %2077 = vmatprep.subr.bf16.mxu0 0
        %2078 = vmatpush1.bf16.msra.mxu0 0
        %2079 = vmatprep.mubr.bf16.mxu0 0
        %2080 = vmatmul.mubr.bf16.gmra.mrb[0].mxu0 %v2042
        %v2081 = vpop.f32.mrb[0].mxu0
        %v2082 = vadd.f32 %v2027, %v2081
        %v2083 = vpop.f32.mrb[0].mxu0
        %v2084 = vpop.f32.mrb[0].mxu0
        %v2085 = vadd.f32 %v2027, %v2084
        %v2086 = vpop.f32.mrb[0].mxu0
        %2087 = vmatprep.mubr.bf16.mxu0 0
        %2088 = vmatmul.mubr.bf16.gmra.mrb[0].mxu0 %v2045
        %v2089 = vpop.f32.mrb[0].mxu0
        %v2090 = vadd.f32 %v2027, %v2089
        %v2091 = vpop.f32.mrb[0].mxu0
        %v2092 = vpop.f32.mrb[0].mxu0
        %v2093 = vadd.f32 %v2027, %v2092
        %v2094 = vpop.f32.mrb[0].mxu0
        %2095 = vdwg.mxu0
        %v2096 = vmul.f32 %v2082, 0.5
        %v2097 = vmul.f32 %v2085, 0.5
        %v2098 = vmul.f32 %v2090, 0.5
        %v2099 = vmul.f32 %v2093, 0.5
        %v2100 = vrcp.pop 1.4142135
        %v2101 = vmul.f32 %v2082, %v2100
        %v2102 = vmul.f32 %v2085, %v2100
        %v2103 = vmul.f32 %v2090, %v2100
        %v2104 = vmul.f32 %v2093, %v2100
        %v2105 = verf.f32.pop %v2101
        %v2106 = verf.f32.pop %v2102
        %v2107 = verf.f32.pop %v2103
        %v2108 = verf.f32.pop %v2104
        %v2109 = vadd.f32 %v2105, 1.0
        %v2110 = vadd.f32 %v2106, 1.0
        %v2111 = vadd.f32 %v2107, 1.0
        %v2112 = vadd.f32 %v2108, 1.0
        %v2113 = vmul.f32 %v2096, %v2109
        %v2114 = vmul.f32 %v2097, %v2110
        %v2115 = vmul.f32 %v2098, %v2111
        %v2116 = vmul.f32 %v2099, %v2112
        %v2117 = vpack.c.bf16 %v2114, %v2113
        %v2118 = vpack.c.bf16 %v2116, %v2115
        %v2119 = vld [vmem:[%s649] sm:$0xf]
        %v2120 = vld [vmem:[%s649 + $0x4] sm:$0xf]
        %v2121 = vld [vmem:[%s649 + $0x8] sm:$0xf]
        %v2122 = vld [vmem:[%s649 + $0xc] sm:$0xf]
        %v2123 = vld [vmem:[%s649 + $0x10] sm:$0xf]
        %v2124 = vld [vmem:[%s649 + $0x14] sm:$0xf]
        %v2125 = vld [vmem:[%s649 + $0x18] sm:$0xf]
        %v2126 = vld [vmem:[%s649 + $0x1c] sm:$0xf]
        %v2127 = vld [vmem:[%s652] sm:$0x1]
        %v2129 = vlaneseq
        %v2130 = vshrl.u32 %v2129, 7
        %v2131 = vsub.s32 0, %v2130
        %v2132 = vrot.slane %v2127, %v2131
        %v2142 = vunpack.c.l.b16 %v2119
        %v2143 = vunpack.c.l.b16 %v2120
        %v2144 = vunpack.c.l.b16 %v2121
        %v2145 = vunpack.c.l.b16 %v2122
        %v2146 = vunpack.c.l.b16 %v2123
        %v2147 = vunpack.c.l.b16 %v2124
        %v2148 = vunpack.c.l.b16 %v2125
        %v2149 = vunpack.c.l.b16 %v2126
        %v2150 = vpack.c.b16 %v2143, %v2142
        %v2151 = vpack.c.b16 %v2145, %v2144
        %v2152 = vpack.c.b16 %v2147, %v2146
        %v2153 = vpack.c.b16 %v2149, %v2148
        %vm2158 = vcmask 523264
        %v2160 = vsel %vm2158, %v2117, 0
        %v2163 = vsel %vm2158, %v2118, 0
        %2165 = vmatprep.subr.bf16.mxu0 0
        %2166 = vmatpush1.bf16.msra.mxu0 %v2150
        %2167 = vmatprep.subr.bf16.mxu0 0
        %2168 = vmatpush1.bf16.msra.mxu0 %v2151
        %2169 = vmatprep.subr.bf16.mxu0 0
        %2170 = vmatpush1.bf16.msra.mxu0 %v2152
        %2171 = vmatprep.subr.bf16.mxu0 0
        %2172 = vmatpush1.bf16.msra.mxu0 %v2153
        %2173 = vmatprep.subr.bf16.mxu0 0
        %2174 = vmatpush1.bf16.msra.mxu0 0
        %2175 = vmatprep.subr.bf16.mxu0 0
        %2176 = vmatpush1.bf16.msra.mxu0 0
        %2177 = vmatprep.subr.bf16.mxu0 0
        %2178 = vmatpush1.bf16.msra.mxu0 0
        %2179 = vmatprep.subr.bf16.mxu0 0
        %2180 = vmatpush1.bf16.msra.mxu0 0
        %2181 = vmatprep.subr.bf16.mxu0 0
        %2182 = vmatpush1.bf16.msra.mxu0 0
        %2183 = vmatprep.subr.bf16.mxu0 0
        %2184 = vmatpush1.bf16.msra.mxu0 0
        %2185 = vmatprep.subr.bf16.mxu0 0
        %2186 = vmatpush1.bf16.msra.mxu0 0
        %2187 = vmatprep.subr.bf16.mxu0 0
        %2188 = vmatpush1.bf16.msra.mxu0 0
        %2189 = vmatprep.subr.bf16.mxu0 0
        %2190 = vmatpush1.bf16.msra.mxu0 0
        %2191 = vmatprep.subr.bf16.mxu0 0
        %2192 = vmatpush1.bf16.msra.mxu0 0
        %2193 = vmatprep.subr.bf16.mxu0 0
        %2194 = vmatpush1.bf16.msra.mxu0 0
        %2195 = vmatprep.subr.bf16.mxu0 0
        %2196 = vmatpush1.bf16.msra.mxu0 0
        %2197 = vmatprep.mubr.bf16.mxu0 0
        %2198 = vmatmul.mubr.bf16.gmra.mrb[0].mxu0 %v2160
        %v2199 = vpop.f32.mrb[0].mxu0
        %v2200 = vadd.f32 %v2132, %v2199
        %v2201 = vpop.f32.mrb[0].mxu0
        %v2202 = vpop.f32.mrb[0].mxu0
        %v2203 = vadd.f32 %v2132, %v2202
        %v2204 = vpop.f32.mrb[0].mxu0
        %2205 = vmatprep.mubr.bf16.mxu0 0
        %2206 = vmatmul.mubr.bf16.gmra.mrb[0].mxu0 %v2163
        %v2207 = vpop.f32.mrb[0].mxu0
        %v2208 = vadd.f32 %v2132, %v2207
        %v2209 = vpop.f32.mrb[0].mxu0
        %v2210 = vpop.f32.mrb[0].mxu0
        %v2211 = vadd.f32 %v2132, %v2210
        %v2212 = vpop.f32.mrb[0].mxu0
        %2213 = vdwg.mxu0
        %v2214 = vadd.f32 %v1938, %v2200
        %v2215 = vadd.f32 %v1939, %v2203
        %v2216 = vadd.f32 %v1940, %v2208
        %v2217 = vadd.f32 %v1941, %v2211
        %p2218 = scmp.lt.s32.totalorder %s27, 1
        // Predicated region
        $region85: #{vit_forward.3} parent=79 // pred_check
          %p2219 = pneg %p2218
        $region86: #{vit_forward.3} parent=79 // pred_check_branch
          %2221 = sbr.rel (%p2219) target = $region88
        $region87: #{vit_forward.3} parent=79 // pred_region
          %2222 = vst.msk [vmem:[#allocation2] sm:$0xff] %vm673, %v2214
          %2223 = vst.msk [vmem:[#allocation2 + $0x8] sm:$0xff] %vm673, %v2215
          %2224 = vst.msk [vmem:[#allocation2 + $0x10] sm:$0xff] %vm673, %v2216
          %2225 = vst.msk [vmem:[#allocation2 + $0x18] sm:$0xff] %vm673, %v2217
        $region88: #{vit_forward.3} parent=79 // pred_fallthru
          _
        %p2226 = scmp.eq.s32.totalorder %s27, 1
        // Predicated region
        $region89: #{vit_forward.3} parent=79 // pred_check
          %p2227 = pneg %p2226
        $region90: #{vit_forward.3} parent=79 // pred_check_branch
          %2229 = sbr.rel (%p2227) target = $region92
        $region91: #{vit_forward.3} parent=79 // pred_region
          %v2230 = vld [vmem:[%s13] sm:$0x1]
          %v2231 = vld [vmem:[%s14] sm:$0x1]
          %v2232 = vsel %vm673, %v2214, 0.0
          %2233 = vadd.xlane.f32.xlu0 %v2232
          %v2234 = vpop.xlane.xlu0 %2233
          %v2235 = vsel %vm673, %v2215, 0.0
          %2236 = vadd.xlane.f32.xlu0 %v2235
          %v2237 = vpop.xlane.xlu0 %2236
          %v2238 = vsel %vm673, %v2216, 0.0
          %2239 = vadd.xlane.f32.xlu0 %v2238
          %v2240 = vpop.xlane.xlu0 %2239
          %v2241 = vsel %vm673, %v2217, 0.0
          %2242 = vadd.xlane.f32.xlu0 %v2241
          %v2243 = vpop.xlane.xlu0 %2242
          %v2244 = vmul.f32 %v2234, %v686
          %v2245 = vmul.f32 %v2237, %v686
          %v2246 = vmul.f32 %v2240, %v686
          %v2247 = vmul.f32 %v2243, %v686
          %v2248 = vsub.f32 %v2214, %v2244
          %v2249 = vsub.f32 %v2215, %v2245
          %v2250 = vsub.f32 %v2216, %v2246
          %v2251 = vsub.f32 %v2217, %v2247
          %v2252 = vmul.f32 %v2248, %v2248
          %v2253 = vmul.f32 %v2249, %v2249
          %v2254 = vmul.f32 %v2250, %v2250
          %v2255 = vmul.f32 %v2251, %v2251
          %v2256 = vsel %vm673, %v2252, 0.0
          %2257 = vadd.xlane.f32.xlu0 %v2256
          %v2258 = vpop.xlane.xlu0 %2257
          %v2259 = vsel %vm673, %v2253, 0.0
          %2260 = vadd.xlane.f32.xlu0 %v2259
          %v2261 = vpop.xlane.xlu0 %2260
          %v2262 = vsel %vm673, %v2254, 0.0
          %2263 = vadd.xlane.f32.xlu0 %v2262
          %v2264 = vpop.xlane.xlu0 %2263
          %v2265 = vsel %vm673, %v2255, 0.0
          %2266 = vadd.xlane.f32.xlu0 %v2265
          %v2267 = vpop.xlane.xlu0 %2266
          %v2268 = vmul.f32 %v2258, %v686
          %v2269 = vmul.f32 %v2261, %v686
          %v2270 = vmul.f32 %v2264, %v686
          %v2271 = vmul.f32 %v2267, %v686
          %v2272 = vadd.f32 %v2268, 1e-05
          %v2273 = vadd.f32 %v2269, 1e-05
          %v2274 = vadd.f32 %v2270, 1e-05
          %v2275 = vadd.f32 %v2271, 1e-05
          %v2276 = vrsqrt.pop %v2272
          %v2277 = vrsqrt.pop %v2273
          %v2278 = vrsqrt.pop %v2274
          %v2279 = vrsqrt.pop %v2275
          %v2280 = vmul.f32 %v2248, %v2276
          %v2281 = vmul.f32 %v2249, %v2277
          %v2282 = vmul.f32 %v2250, %v2278
          %v2283 = vmul.f32 %v2251, %v2279
          %v2285 = vlaneseq
          %v2286 = vshrl.u32 %v2285, 7
          %v2287 = vsub.s32 0, %v2286
          %v2288 = vrot.slane %v2230, %v2287
          %v2290 = vmul.f32 %v2280, %v2288
          %v2291 = vmul.f32 %v2281, %v2288
          %v2292 = vmul.f32 %v2282, %v2288
          %v2293 = vmul.f32 %v2283, %v2288
          %v2295 = vlaneseq
          %v2296 = vshrl.u32 %v2295, 7
          %v2297 = vsub.s32 0, %v2296
          %v2298 = vrot.slane %v2231, %v2297
          %v2300 = vadd.f32 %v2290, %v2298
          %v2301 = vadd.f32 %v2291, %v2298
          %v2302 = vadd.f32 %v2292, %v2298
          %v2303 = vadd.f32 %v2293, %v2298
          %2304 = vst.msk [vmem:[#allocation2] sm:$0xff] %vm673, %v2300
          %2305 = vst.msk [vmem:[#allocation2 + $0x8] sm:$0xff] %vm673, %v2301
          %2306 = vst.msk [vmem:[#allocation2 + $0x10] sm:$0xff] %vm673, %v2302
          %2307 = vst.msk [vmem:[#allocation2 + $0x18] sm:$0xff] %vm673, %v2303
        $region92: #{vit_forward.3} parent=79 // pred_fallthru
          _
        // Predicated region
        $region93: #{vit_forward.3} parent=79 // pred_check
          %p2308 = pneg %p415
        $region94: #{vit_forward.3} parent=79 // pred_check_branch
          %2310 = sbr.rel (%p2308) target = $region96
        $region95: #{vit_forward.3} parent=79 // pred_region
          %s2312 = ssub.s32 512, 512
          %2313 = vsyncadd [#allocation3], %s2312
          %s2314 = sshll.u32 [#allocation2], 4
          %s2315 = int_to_ptr.vmem [resolvable:$true] %s2314
          %2320 = dma.vmem_to_hbm [thread:$0]  %s2315, 512, %s15, [#allocation3], 128, 128, 8
        $region96: #{vit_forward.3} parent=79 // pred_fallthru
          _
        // Predicated region
        $region97: #{vit_forward.3} parent=79 // pred_check
          %p2321 = pneg %p415
        $region98: #{vit_forward.3} parent=79 // pred_check_branch
          %2323 = sbr.rel (%p2321) target = $region100
        $region99: #{vit_forward.3} parent=79 // pred_region
          %2324 = dma.done [#allocation3], 512
        $region100: #{vit_forward.3} parent=79 // pred_fallthru
          _
      $region80: #{vit_forward.3} parent=5 // pred_fallthru
        _
      %p2325 = scmp.le.s32.totalorder 2, %s22
      // Predicated region
      $region101: #{vit_forward.3} parent=5 // pred_check
        %p2326 = pneg %p2325
      $region102: #{vit_forward.3} parent=5 // pred_check_branch
        %2328 = sbr.rel (%p2326) target = $region104
      $region103: #{vit_forward.3} parent=5 // pred_region
        %s2329 = ssub.s32 %s22, 2
      $region104: #{vit_forward.3} parent=5 // pred_fallthru
        _
    $region6: #{vit_forward.3} parent=1 // loop_footer
      %s26 = sadd.s32 1, %s22
    $region7: #{vit_forward.3} parent=1 // loop_footer_branch
      %21 = sbr.rel target = $region3
    $region8: #{vit_forward.3} parent=1 // loop_exit
      _
    %2330 = vsyncpa [#allocation3], 1
    %s2331 = scalar_lea.sflag [#allocation3], 1
    %2332 = vsyncpa %s2331, 1

</llo_original>
